<compile_context>
chip_gen: v6e
topology: v6e:2x2x1
jax: 0.10.0
libtpu: 0.0.40
codegen_flags: <defaults>
</compile_context>

<pallas_src>
import functools

import jax
import jax.numpy as jnp
import numpy as np
from jax.experimental import pallas as pl
from jax.experimental.pallas import tpu as pltpu

M_LO, M_UP, C_LO, C_UP = 0.6847, 0.7132, 0.4703, 0.3338
_LO_C = np.float32(M_LO * C_LO)   # m_lo * c_lo, rounded once to f32
_UP_C = np.float32(M_UP * C_UP)   # m_up * c_up


def _lstm_backlash_kernel(points_ref, pre0_ref, h0_ref, c0_ref,
                          wfused_ref, wih0_ref, b0_ref, b1_ref,
                          whead_ref, blin_ref,
                          out_ref, hN_ref, cN_ref, custom_ref, lin_ref,
                          acts_ref,
                          *, act, mxu_dtype):
    B, T = points_ref.shape
    H = wfused_ref.shape[0] // 2
    G = 4 * H

    x_all = points_ref[...]                  # (B, T)  one dense load
    wih0 = wih0_ref[...]                     # (1, 4H) f32
    b0 = b0_ref[...]                         # (1, 4H)  (= b_ih_l0 + b_hh_l0)
    b1 = b1_ref[...]                         # (1, 4H)  (= b_ih_l1 + b_hh_l1)
    W = wfused_ref[...]                      # (2H, 8H) block-fused, mxu_dtype
    W0 = W[:H, :G]                           # whh0           (H, 4H)
    W1 = W[:, G:]                            # [wih1; whh1]   (2H, 4H)

    h0 = h0_ref[0]; h1 = h0_ref[1]           # (B, H) f32
    c0 = c0_ref[0]; c1 = c0_ref[1]
    prev = pre0_ref[...]                     # (B, 1) backlash state

    def lstm_cell(gates, c):
        # One full-width sigmoid + one tanh on the g block (2 EUP pushes).
        # PyTorch gate order: i, f, g, o.
        # TODO(synk): if a bundle dump shows XLU (gate lane-slicing) on the
        # critical path, permute the fused-weight output columns / replicate c
        # across the four gate blocks so the combines happen in-place.
        sig = jax.nn.sigmoid(gates)
        g = jnp.tanh(gates[:, 2 * H:3 * H])
        i = sig[:, 0:H]
        f = sig[:, H:2 * H]
        o = sig[:, 3 * H:4 * H]
        c_new = f * c + i * g
        return o * jnp.tanh(c_new), c_new

    def gx(t):
        # x-dependent layer-0 gate part for time t (inp_dim=1 -> VPU broadcast,
        # off the serial recurrence chain, computed in-loop to bound live vregs).
        return x_all[:, t:t + 1] * wih0 + b0

    def record(t, h1_val):
        out_t = h1_val
        if act == "tanh":
            out_t = jnp.tanh(out_t)
        elif act == "relu":
            out_t = jnp.maximum(out_t, 0.0)
        acts_ref[:, t * H:(t + 1) * H] = out_t          # lane-dense slab for the head

    # ---- staggered (wavefront) LSTM recurrence: T+1 dependent matmuls -------
    # Prologue: layer-0, time 0.
    gates0 = gx(0) + jnp.dot(h0.astype(mxu_dtype), W0,
                             preferred_element_type=jnp.float32)
    h0, c0 = lstm_cell(gates0, c0)

    # Macro-steps s = 1..T-1: layer-0 @ time s AND layer-1 @ time s-1 from one
    # fused matmul.  The two cell updates are independent within a macro-step.
    # TODO(synk): for production-scale T, wrap chunks of this unroll in
    # lax.fori_loop(..., unroll=True) (or move time onto an "arbitrary" grid
    # axis with h/c/prev carried in VMEM scratch) to bound vreg pressure and
    # code size; consider pltpu.matmul_push_rhs to keep the loop-invariant
    # fused RHS resident in the MXU across the unroll.
    for s in range(1, T):
        lhs = jnp.concatenate([h0, h1], axis=1).astype(mxu_dtype)     # (B, 2H)
        gboth = jnp.dot(lhs, W, preferred_element_type=jnp.float32)   # (B, 8H)
        h1, c1 = lstm_cell(gboth[:, G:] + b1, c1)        # layer-1, time s-1
        h0, c0 = lstm_cell(gx(s) + gboth[:, :G], c0)     # layer-0, time s
        record(s - 1, h1)

    # Epilogue: layer-1, time T-1.
    lhs = jnp.concatenate([h0, h1], axis=1).astype(mxu_dtype)
    gates1 = jnp.dot(lhs, W1, preferred_element_type=jnp.float32) + b1
    h1, c1 = lstm_cell(gates1, c1)
    record(T - 1, h1)

    # ---- fixedBacklash recurrence (VPU-only, division-free) ------------------
    lo_all = M_LO * x_all + _LO_C            # (B, T)
    up_all = M_UP * x_all + _UP_C            # (B, T)
    for t in range(T):
        lo_t = lo_all[:, t:t + 1]
        up_t = up_all[:, t:t + 1]
        f1 = jnp.where(lo_t <= prev, 1.0, 0.0)
        f2 = jnp.where(prev <= up_t, 1.0, 0.0)
        prev = lo_t * f1 + up_t * f2 + prev * (1.0 - f1) * (1.0 - f2)
        custom_ref[:, t:t + 1] = prev

    # ---- linear head: ONE matmul over the activation slab --------------------
    # acts (B, T*H) @ block-diag head weight (T*H, T) -> lane-dense (B, T).
    lin = jnp.dot(acts_ref[...], whead_ref[...],
                  preferred_element_type=jnp.float32) + blin_ref[...]
    custom = custom_ref[...]
    lin_ref[...] = lin
    out_ref[...] = lin + custom
    hN_ref[0] = h0
    hN_ref[1] = h1
    cN_ref[0] = c0
    cN_ref[1] = c1


def prepare_params(params, seq_len, mxu_dtype=jnp.bfloat16):
    """One-time weight preprocessing (hoisted out of the per-call path).

    Builds the block-fused recurrent weight W = [[whh0, wih1], [0, whh1]]
    (2H, 8H) in `mxu_dtype`, and the block-diagonal linear-head weight
    (seq_len*H, seq_len) whose column t holds the linear weight in rows
    t*H:(t+1)*H.
    """
    H = params["whh0"].shape[0]
    G = 4 * H
    T = seq_len
    top = jnp.concatenate([params["whh0"], params["wih1"]], axis=1)          # (H, 8H)
    bot = jnp.concatenate([jnp.zeros((H, G), jnp.float32), params["whh1"]],
                          axis=1)                                            # (H, 8H)
    w_fused = jnp.concatenate([top, bot], axis=0).astype(mxu_dtype)          # (2H, 8H)
    eye_t = jnp.eye(T, dtype=jnp.float32)                                    # (T, T)
    w_head = (params["wlin"][:, 0][None, :, None]
              * eye_t[:, None, :]).reshape(T * H, T)                         # (T*H, T)
    return dict(
        w_fused=w_fused,
        wih0=params["wih0"].astype(jnp.float32),       # (1, 4H)
        b0=params["b0"].astype(jnp.float32),           # (1, 4H)
        b1=params["b1"].astype(jnp.float32),           # (1, 4H)
        w_head=w_head,                                 # (T*H, T) f32
        blin=params["blin"].astype(jnp.float32),       # (1, 1)
    )


def lstm_backlash_sum2_forward(prepped, points, pre_points, hidden, act=None):
    """points / pre_points: (B, T, 1); hidden = (h0, c0), each (2, B, H)."""
    B, T, _ = points.shape
    H = prepped["w_fused"].shape[0] // 2
    assert prepped["w_head"].shape == (T * H, T), "prepare_params seq_len mismatch"
    h0, c0 = hidden

    points_k = points[..., 0].astype(jnp.float32)        # (B, T)
    pre0 = pre_points[:, 0, :].astype(jnp.float32)       # (B, 1)

    kernel = functools.partial(_lstm_backlash_kernel, act=act,
                               mxu_dtype=prepped["w_fused"].dtype)
    out_shapes = (
        jax.ShapeDtypeStruct((B, T), jnp.float32),       # output
        jax.ShapeDtypeStruct((2, B, H), jnp.float32),    # h_n
        jax.ShapeDtypeStruct((2, B, H), jnp.float32),    # c_n
        jax.ShapeDtypeStruct((B, T), jnp.float32),       # custom_output
        jax.ShapeDtypeStruct((B, T), jnp.float32),       # linear_out
    )
    vmem = pl.BlockSpec(memory_space=pltpu.MemorySpace.VMEM)
    # NOTE: gridless / single TensorCore (latency-bound serial recurrence).
    # On v7x with a large batch, add a leading batch grid axis of size 2 with
    # dimension_semantics=("parallel",) to split batch rows across the 2 TCs;
    # at B<=8 it is pure overhead on every generation.
    out, hN, cN, custom, lin = pl.pallas_call(
        kernel,
        out_shape=out_shapes,
        in_specs=[vmem] * 10,
        out_specs=(vmem,) * 5,
        scratch_shapes=[pltpu.VMEM((B, T * H), jnp.float32)],
    )(points_k, pre0, h0, c0,
      prepped["w_fused"], prepped["wih0"], prepped["b0"], prepped["b1"],
      prepped["w_head"], prepped["blin"])

    return (out[..., None], (hN, cN), custom[..., None], lin[..., None])


def init_params(key, hidden_dim=32, inp_dim=1):
    """Deterministic synthetic params, PyTorch-style uniform(-1/sqrt(H), 1/sqrt(H))."""
    H = hidden_dim
    k = 1.0 / float(np.sqrt(H))
    keys = jax.random.split(key, 10)

    def u(kk, shape):
        return jax.random.uniform(kk, shape, jnp.float32, -k, k)

    return dict(
        wih0=u(keys[0], (inp_dim, 4 * H)),            # weight_ih_l0^T
        whh0=u(keys[1], (H, 4 * H)),                  # weight_hh_l0^T
        b0=u(keys[2], (1, 4 * H)) + u(keys[3], (1, 4 * H)),   # b_ih_l0 + b_hh_l0
        wih1=u(keys[4], (H, 4 * H)),                  # weight_ih_l1^T
        whh1=u(keys[5], (H, 4 * H)),                  # weight_hh_l1^T
        b1=u(keys[6], (1, 4 * H)) + u(keys[7], (1, 4 * H)),   # b_ih_l1 + b_hh_l1
        wlin=u(keys[8], (H, 1)),                      # linear weight^T
        blin=u(keys[9], (1, 1)),                      # linear bias
    )


def reference_forward(params, points, pre_points, hidden, act=None):
    """Pure-JAX f32 reference mirroring the PyTorch forward (with divisions)."""
    B, T, _ = points.shape
    H = params["whh0"].shape[0]
    h0_all, c0_all = hidden
    h = [h0_all[0], h0_all[1]]
    c = [c0_all[0], c0_all[1]]
    prev = pre_points[:, 0, :]
    lin_all, custom_all = [], []

    def gates_to_hc(g_, c_):
        i = jax.nn.sigmoid(g_[:, :H]); f = jax.nn.sigmoid(g_[:, H:2 * H])
        g = jnp.tanh(g_[:, 2 * H:3 * H]); o = jax.nn.sigmoid(g_[:, 3 * H:])
        c_new = f * c_ + i * g
        return o * jnp.tanh(c_new), c_new

    for t in range(T):
        x_t = points[:, t, :]
        h[0], c[0] = gates_to_hc(x_t @ params["wih0"] + h[0] @ params["whh0"] + params["b0"], c[0])
        h[1], c[1] = gates_to_hc(h[0] @ params["wih1"] + h[1] @ params["whh1"] + params["b1"], c[1])
        lo = h[1]
        if act == "tanh":
            lo = jnp.tanh(lo)
        elif act == "relu":
            lo = jnp.maximum(lo, 0.0)
        lin_t = lo @ params["wlin"] + params["blin"]
        s1 = (M_LO * x_t + M_LO * C_LO - prev) / M_LO
        s2 = (prev - M_UP * x_t - M_UP * C_UP) / M_UP
        f1 = jnp.where(s1 <= 0.0, 1.0, 0.0)
        f2 = jnp.where(s2 <= 0.0, 1.0, 0.0)
        prev = (M_LO * x_t * f1 + M_LO * C_LO * f1
                + M_UP * x_t * f2 + M_UP * C_UP * f2
                + prev * (1.0 - f1) * (1.0 - f2))
        lin_all.append(lin_t)
        custom_all.append(prev)
    lin = jnp.stack(lin_all, axis=1)
    custom = jnp.stack(custom_all, axis=1)
    return lin + custom, (jnp.stack(h), jnp.stack(c)), custom, lin


def _check(got, ref, rtol, atol):
    out_g, (h_g, c_g), cust_g, lin_g = got
    out_r, (h_r, c_r), cust_r, lin_r = ref
    np.testing.assert_allclose(np.asarray(out_g), np.asarray(out_r), rtol=rtol, atol=atol)
    np.testing.assert_allclose(np.asarray(cust_g), np.asarray(cust_r), rtol=rtol, atol=atol)
    np.testing.assert_allclose(np.asarray(lin_g), np.asarray(lin_r), rtol=rtol, atol=atol)
    np.testing.assert_allclose(np.asarray(h_g), np.asarray(h_r), rtol=rtol, atol=atol)
    np.testing.assert_allclose(np.asarray(c_g), np.asarray(c_r), rtol=rtol, atol=atol)


if __name__ == "__main__":
    B, T, H = 2, 8, 32
    key = jax.random.PRNGKey(0)
    kp, kx, kpre, kh, kc = jax.random.split(key, 5)

    params = init_params(kp, hidden_dim=H, inp_dim=1)
    points = jax.random.normal(kx, (B, T, 1), jnp.float32)
    pre_points = jax.random.normal(kpre, (B, T, 1), jnp.float32)
    h0 = 0.1 * jax.random.normal(kh, (2, B, H), jnp.float32)
    c0 = 0.1 * jax.random.normal(kc, (2, B, H), jnp.float32)

    ref = reference_forward(params, points, pre_points, (h0, c0), act=None)

    # f32 MXU operands: strict tolerance (only summation-order differences).
    prepped_f32 = prepare_params(params, seq_len=T, mxu_dtype=jnp.float32)
    got_f32 = lstm_backlash_sum2_forward(prepped_f32, points, pre_points, (h0, c0), act=None)
    jax.block_until_ready(got_f32[0])
    _check(got_f32, ref, rtol=2e-3, atol=2e-3)

    # bf16 MXU operands (default, faster recurrent matmuls): looser tolerance —
    # bf16 operand rounding compounds through the T-step recurrence.
    prepped_bf16 = prepare_params(params, seq_len=T, mxu_dtype=jnp.bfloat16)
    got_bf16 = lstm_backlash_sum2_forward(prepped_bf16, points, pre_points, (h0, c0), act=None)
    jax.block_until_ready(got_bf16[0])
    _check(got_bf16, ref, rtol=2e-2, atol=2e-2)

    print("KERNEL_OK")
</pallas_src>

<mosaic_0001>
module attributes {stable_mosaic.version = 11 : i64} {
  func.func @_lstm_backlash_kernel(%arg0: memref<2x8xf32, #tpu.memory_space<vmem>>, %arg1: memref<2x1xf32, #tpu.memory_space<vmem>>, %arg2: memref<2x2x32xf32, #tpu.memory_space<vmem>>, %arg3: memref<2x2x32xf32, #tpu.memory_space<vmem>>, %arg4: memref<64x256xf32, #tpu.memory_space<vmem>>, %arg5: memref<1x128xf32, #tpu.memory_space<vmem>>, %arg6: memref<1x128xf32, #tpu.memory_space<vmem>>, %arg7: memref<1x128xf32, #tpu.memory_space<vmem>>, %arg8: memref<256x8xf32, #tpu.memory_space<vmem>>, %arg9: memref<1x1xf32, #tpu.memory_space<vmem>>, %arg10: memref<2x8xf32, #tpu.memory_space<vmem>>, %arg11: memref<2x2x32xf32, #tpu.memory_space<vmem>>, %arg12: memref<2x2x32xf32, #tpu.memory_space<vmem>>, %arg13: memref<2x8xf32, #tpu.memory_space<vmem>>, %arg14: memref<2x8xf32, #tpu.memory_space<vmem>>, %arg15: memref<2x256xf32, #tpu.memory_space<vmem>>) attributes {dimension_semantics = [], scalar_prefetch = 0 : i64, scratch_operands = 1 : i64, tpu.core_type = #tpu.core_type<tc>} {
    %c0 = arith.constant 0 : index
    %c0_0 = arith.constant 0 : index
    %0 = vector.load %arg0[%c0, %c0_0] : memref<2x8xf32, #tpu.memory_space<vmem>>, vector<2x8xf32>
    %c0_1 = arith.constant 0 : index
    %c0_2 = arith.constant 0 : index
    %1 = vector.load %arg5[%c0_1, %c0_2] : memref<1x128xf32, #tpu.memory_space<vmem>>, vector<1x128xf32>
    %c0_3 = arith.constant 0 : index
    %c0_4 = arith.constant 0 : index
    %2 = vector.load %arg6[%c0_3, %c0_4] : memref<1x128xf32, #tpu.memory_space<vmem>>, vector<1x128xf32>
    %c0_5 = arith.constant 0 : index
    %c0_6 = arith.constant 0 : index
    %3 = vector.load %arg7[%c0_5, %c0_6] : memref<1x128xf32, #tpu.memory_space<vmem>>, vector<1x128xf32>
    %c0_7 = arith.constant 0 : index
    %c0_8 = arith.constant 0 : index
    %4 = vector.load %arg4[%c0_7, %c0_8] : memref<64x256xf32, #tpu.memory_space<vmem>>, vector<64x256xf32>
    %5 = vector.extract_strided_slice %4 {offsets = [0, 0], sizes = [32, 128], strides = [1, 1]} : vector<64x256xf32> to vector<32x128xf32>
    %6 = vector.extract_strided_slice %4 {offsets = [0, 128], sizes = [64, 128], strides = [1, 1]} : vector<64x256xf32> to vector<64x128xf32>
    %c0_9 = arith.constant 0 : index
    %c0_10 = arith.constant 0 : index
    %c0_11 = arith.constant 0 : index
    %7 = vector.load %arg2[%c0_9, %c0_10, %c0_11] : memref<2x2x32xf32, #tpu.memory_space<vmem>>, vector<1x2x32xf32>
    %8 = vector.shape_cast %7 : vector<1x2x32xf32> to vector<2x32xf32>
    %c1 = arith.constant 1 : index
    %c0_12 = arith.constant 0 : index
    %c0_13 = arith.constant 0 : index
    %9 = vector.load %arg2[%c1, %c0_12, %c0_13] : memref<2x2x32xf32, #tpu.memory_space<vmem>>, vector<1x2x32xf32>
    %10 = vector.shape_cast %9 : vector<1x2x32xf32> to vector<2x32xf32>
    %c0_14 = arith.constant 0 : index
    %c0_15 = arith.constant 0 : index
    %c0_16 = arith.constant 0 : index
    %11 = vector.load %arg3[%c0_14, %c0_15, %c0_16] : memref<2x2x32xf32, #tpu.memory_space<vmem>>, vector<1x2x32xf32>
    %12 = vector.shape_cast %11 : vector<1x2x32xf32> to vector<2x32xf32>
    %c1_17 = arith.constant 1 : index
    %c0_18 = arith.constant 0 : index
    %c0_19 = arith.constant 0 : index
    %13 = vector.load %arg3[%c1_17, %c0_18, %c0_19] : memref<2x2x32xf32, #tpu.memory_space<vmem>>, vector<1x2x32xf32>
    %14 = vector.shape_cast %13 : vector<1x2x32xf32> to vector<2x32xf32>
    %c0_20 = arith.constant 0 : index
    %c0_21 = arith.constant 0 : index
    %15 = vector.load %arg1[%c0_20, %c0_21] : memref<2x1xf32, #tpu.memory_space<vmem>>, vector<2x1xf32>
    %16 = vector.extract_strided_slice %0 {offsets = [0, 0], sizes = [2, 1], strides = [1, 1]} : vector<2x8xf32> to vector<2x1xf32>
    %17 = vector.broadcast %16 : vector<2x1xf32> to vector<2x128xf32>
    %18 = vector.broadcast %1 : vector<1x128xf32> to vector<2x128xf32>
    %19 = arith.mulf %17, %18 : vector<2x128xf32>
    %20 = vector.broadcast %2 : vector<1x128xf32> to vector<2x128xf32>
    %21 = arith.addf %19, %20 : vector<2x128xf32>
    %cst = arith.constant dense<0.000000e+00> : vector<2x128xf32>
    %22 = tpu.matmul %8, %5, %cst {dimension_numbers = #tpu.dot_dimension_numbers<[1], [0], [0], [1], [0, 0, 1, 1], [], []>} : vector<2x32xf32>, vector<32x128xf32>, vector<2x128xf32> -> vector<2x128xf32>
    %23 = arith.addf %21, %22 : vector<2x128xf32>
    %24 = arith.negf %23 : vector<2x128xf32>
    %25 = math.exp %24 : vector<2x128xf32>
    %cst_22 = arith.constant 1.000000e+00 : f32
    %26 = vector.broadcast %cst_22 : f32 to vector<2x128xf32>
    %27 = arith.addf %26, %25 : vector<2x128xf32>
    %28 = arith.divf %26, %27 : vector<2x128xf32>
    %29 = vector.extract_strided_slice %23 {offsets = [0, 64], sizes = [2, 32], strides = [1, 1]} : vector<2x128xf32> to vector<2x32xf32>
    %30 = math.tanh %29 : vector<2x32xf32>
    %31 = vector.extract_strided_slice %28 {offsets = [0, 0], sizes = [2, 32], strides = [1, 1]} : vector<2x128xf32> to vector<2x32xf32>
    %32 = vector.extract_strided_slice %28 {offsets = [0, 32], sizes = [2, 32], strides = [1, 1]} : vector<2x128xf32> to vector<2x32xf32>
    %33 = vector.extract_strided_slice %28 {offsets = [0, 96], sizes = [2, 32], strides = [1, 1]} : vector<2x128xf32> to vector<2x32xf32>
    %34 = arith.mulf %32, %12 : vector<2x32xf32>
    %35 = arith.mulf %31, %30 : vector<2x32xf32>
    %36 = arith.addf %34, %35 : vector<2x32xf32>
    %37 = math.tanh %36 : vector<2x32xf32>
    %38 = arith.mulf %33, %37 : vector<2x32xf32>
    %39 = tpu.concatenate %38, %10 in 1 : vector<2x32xf32>, vector<2x32xf32> -> vector<2x64xf32>
    %cst_23 = arith.constant dense<0.000000e+00> : vector<2x256xf32>
    %40 = tpu.matmul %39, %4, %cst_23 {dimension_numbers = #tpu.dot_dimension_numbers<[1], [0], [0], [1], [0, 0, 1, 1], [], []>} : vector<2x64xf32>, vector<64x256xf32>, vector<2x256xf32> -> vector<2x256xf32>
    %41 = vector.extract_strided_slice %40 {offsets = [0, 128], sizes = [2, 128], strides = [1, 1]} : vector<2x256xf32> to vector<2x128xf32>
    %42 = vector.broadcast %3 : vector<1x128xf32> to vector<2x128xf32>
    %43 = arith.addf %41, %42 : vector<2x128xf32>
    %44 = arith.negf %43 : vector<2x128xf32>
    %45 = math.exp %44 : vector<2x128xf32>
    %cst_24 = arith.constant 1.000000e+00 : f32
    %46 = vector.broadcast %cst_24 : f32 to vector<2x128xf32>
    %47 = arith.addf %46, %45 : vector<2x128xf32>
    %48 = arith.divf %46, %47 : vector<2x128xf32>
    %49 = vector.extract_strided_slice %43 {offsets = [0, 64], sizes = [2, 32], strides = [1, 1]} : vector<2x128xf32> to vector<2x32xf32>
    %50 = math.tanh %49 : vector<2x32xf32>
    %51 = vector.extract_strided_slice %48 {offsets = [0, 0], sizes = [2, 32], strides = [1, 1]} : vector<2x128xf32> to vector<2x32xf32>
    %52 = vector.extract_strided_slice %48 {offsets = [0, 32], sizes = [2, 32], strides = [1, 1]} : vector<2x128xf32> to vector<2x32xf32>
    %53 = vector.extract_strided_slice %48 {offsets = [0, 96], sizes = [2, 32], strides = [1, 1]} : vector<2x128xf32> to vector<2x32xf32>
    %54 = arith.mulf %52, %14 : vector<2x32xf32>
    %55 = arith.mulf %51, %50 : vector<2x32xf32>
    %56 = arith.addf %54, %55 : vector<2x32xf32>
    %57 = math.tanh %56 : vector<2x32xf32>
    %58 = arith.mulf %53, %57 : vector<2x32xf32>
    %59 = vector.extract_strided_slice %0 {offsets = [0, 1], sizes = [2, 1], strides = [1, 1]} : vector<2x8xf32> to vector<2x1xf32>
    %60 = vector.broadcast %59 : vector<2x1xf32> to vector<2x128xf32>
    %61 = vector.broadcast %1 : vector<1x128xf32> to vector<2x128xf32>
    %62 = arith.mulf %60, %61 : vector<2x128xf32>
    %63 = vector.broadcast %2 : vector<1x128xf32> to vector<2x128xf32>
    %64 = arith.addf %62, %63 : vector<2x128xf32>
    %65 = vector.extract_strided_slice %40 {offsets = [0, 0], sizes = [2, 128], strides = [1, 1]} : vector<2x256xf32> to vector<2x128xf32>
    %66 = arith.addf %64, %65 : vector<2x128xf32>
    %67 = arith.negf %66 : vector<2x128xf32>
    %68 = math.exp %67 : vector<2x128xf32>
    %cst_25 = arith.constant 1.000000e+00 : f32
    %69 = vector.broadcast %cst_25 : f32 to vector<2x128xf32>
    %70 = arith.addf %69, %68 : vector<2x128xf32>
    %71 = arith.divf %69, %70 : vector<2x128xf32>
    %72 = vector.extract_strided_slice %66 {offsets = [0, 64], sizes = [2, 32], strides = [1, 1]} : vector<2x128xf32> to vector<2x32xf32>
    %73 = math.tanh %72 : vector<2x32xf32>
    %74 = vector.extract_strided_slice %71 {offsets = [0, 0], sizes = [2, 32], strides = [1, 1]} : vector<2x128xf32> to vector<2x32xf32>
    %75 = vector.extract_strided_slice %71 {offsets = [0, 32], sizes = [2, 32], strides = [1, 1]} : vector<2x128xf32> to vector<2x32xf32>
    %76 = vector.extract_strided_slice %71 {offsets = [0, 96], sizes = [2, 32], strides = [1, 1]} : vector<2x128xf32> to vector<2x32xf32>
    %77 = arith.mulf %75, %36 : vector<2x32xf32>
    %78 = arith.mulf %74, %73 : vector<2x32xf32>
    %79 = arith.addf %77, %78 : vector<2x32xf32>
    %80 = math.tanh %79 : vector<2x32xf32>
    %81 = arith.mulf %76, %80 : vector<2x32xf32>
    %c0_26 = arith.constant 0 : index
    %c0_27 = arith.constant 0 : index
    %82 = vector.load %arg15[%c0_26, %c0_27] : memref<2x256xf32, #tpu.memory_space<vmem>>, vector<2x32xf32>
    tpu.vector_store %arg15[%c0_26, %c0_27], %58 {strides = array<i32>} : memref<2x256xf32, #tpu.memory_space<vmem>>, vector<2x32xf32>,
    %83 = tpu.concatenate %81, %58 in 1 : vector<2x32xf32>, vector<2x32xf32> -> vector<2x64xf32>
    %cst_28 = arith.constant dense<0.000000e+00> : vector<2x256xf32>
    %84 = tpu.matmul %83, %4, %cst_28 {dimension_numbers = #tpu.dot_dimension_numbers<[1], [0], [0], [1], [0, 0, 1, 1], [], []>} : vector<2x64xf32>, vector<64x256xf32>, vector<2x256xf32> -> vector<2x256xf32>
    %85 = vector.extract_strided_slice %84 {offsets = [0, 128], sizes = [2, 128], strides = [1, 1]} : vector<2x256xf32> to vector<2x128xf32>
    %86 = vector.broadcast %3 : vector<1x128xf32> to vector<2x128xf32>
    %87 = arith.addf %85, %86 : vector<2x128xf32>
    %88 = arith.negf %87 : vector<2x128xf32>
    %89 = math.exp %88 : vector<2x128xf32>
    %cst_29 = arith.constant 1.000000e+00 : f32
    %90 = vector.broadcast %cst_29 : f32 to vector<2x128xf32>
    %91 = arith.addf %90, %89 : vector<2x128xf32>
    %92 = arith.divf %90, %91 : vector<2x128xf32>
    %93 = vector.extract_strided_slice %87 {offsets = [0, 64], sizes = [2, 32], strides = [1, 1]} : vector<2x128xf32> to vector<2x32xf32>
    %94 = math.tanh %93 : vector<2x32xf32>
    %95 = vector.extract_strided_slice %92 {offsets = [0, 0], sizes = [2, 32], strides = [1, 1]} : vector<2x128xf32> to vector<2x32xf32>
    %96 = vector.extract_strided_slice %92 {offsets = [0, 32], sizes = [2, 32], strides = [1, 1]} : vector<2x128xf32> to vector<2x32xf32>
    %97 = vector.extract_strided_slice %92 {offsets = [0, 96], sizes = [2, 32], strides = [1, 1]} : vector<2x128xf32> to vector<2x32xf32>
    %98 = arith.mulf %96, %56 : vector<2x32xf32>
    %99 = arith.mulf %95, %94 : vector<2x32xf32>
    %100 = arith.addf %98, %99 : vector<2x32xf32>
    %101 = math.tanh %100 : vector<2x32xf32>
    %102 = arith.mulf %97, %101 : vector<2x32xf32>
    %103 = vector.extract_strided_slice %0 {offsets = [0, 2], sizes = [2, 1], strides = [1, 1]} : vector<2x8xf32> to vector<2x1xf32>
    %104 = vector.broadcast %103 : vector<2x1xf32> to vector<2x128xf32>
    %105 = vector.broadcast %1 : vector<1x128xf32> to vector<2x128xf32>
    %106 = arith.mulf %104, %105 : vector<2x128xf32>
    %107 = vector.broadcast %2 : vector<1x128xf32> to vector<2x128xf32>
    %108 = arith.addf %106, %107 : vector<2x128xf32>
    %109 = vector.extract_strided_slice %84 {offsets = [0, 0], sizes = [2, 128], strides = [1, 1]} : vector<2x256xf32> to vector<2x128xf32>
    %110 = arith.addf %108, %109 : vector<2x128xf32>
    %111 = arith.negf %110 : vector<2x128xf32>
    %112 = math.exp %111 : vector<2x128xf32>
    %cst_30 = arith.constant 1.000000e+00 : f32
    %113 = vector.broadcast %cst_30 : f32 to vector<2x128xf32>
    %114 = arith.addf %113, %112 : vector<2x128xf32>
    %115 = arith.divf %113, %114 : vector<2x128xf32>
    %116 = vector.extract_strided_slice %110 {offsets = [0, 64], sizes = [2, 32], strides = [1, 1]} : vector<2x128xf32> to vector<2x32xf32>
    %117 = math.tanh %116 : vector<2x32xf32>
    %118 = vector.extract_strided_slice %115 {offsets = [0, 0], sizes = [2, 32], strides = [1, 1]} : vector<2x128xf32> to vector<2x32xf32>
    %119 = vector.extract_strided_slice %115 {offsets = [0, 32], sizes = [2, 32], strides = [1, 1]} : vector<2x128xf32> to vector<2x32xf32>
    %120 = vector.extract_strided_slice %115 {offsets = [0, 96], sizes = [2, 32], strides = [1, 1]} : vector<2x128xf32> to vector<2x32xf32>
    %121 = arith.mulf %119, %79 : vector<2x32xf32>
    %122 = arith.mulf %118, %117 : vector<2x32xf32>
    %123 = arith.addf %121, %122 : vector<2x32xf32>
    %124 = math.tanh %123 : vector<2x32xf32>
    %125 = arith.mulf %120, %124 : vector<2x32xf32>
    %c0_31 = arith.constant 0 : index
    %c32 = arith.constant 32 : index
    %126 = vector.load %arg15[%c0_31, %c32] : memref<2x256xf32, #tpu.memory_space<vmem>>, vector<2x32xf32>
    tpu.vector_store %arg15[%c0_31, %c32], %102 {strides = array<i32>} : memref<2x256xf32, #tpu.memory_space<vmem>>, vector<2x32xf32>,
    %127 = tpu.concatenate %125, %102 in 1 : vector<2x32xf32>, vector<2x32xf32> -> vector<2x64xf32>
    %cst_32 = arith.constant dense<0.000000e+00> : vector<2x256xf32>
    %128 = tpu.matmul %127, %4, %cst_32 {dimension_numbers = #tpu.dot_dimension_numbers<[1], [0], [0], [1], [0, 0, 1, 1], [], []>} : vector<2x64xf32>, vector<64x256xf32>, vector<2x256xf32> -> vector<2x256xf32>
    %129 = vector.extract_strided_slice %128 {offsets = [0, 128], sizes = [2, 128], strides = [1, 1]} : vector<2x256xf32> to vector<2x128xf32>
    %130 = vector.broadcast %3 : vector<1x128xf32> to vector<2x128xf32>
    %131 = arith.addf %129, %130 : vector<2x128xf32>
    %132 = arith.negf %131 : vector<2x128xf32>
    %133 = math.exp %132 : vector<2x128xf32>
    %cst_33 = arith.constant 1.000000e+00 : f32
    %134 = vector.broadcast %cst_33 : f32 to vector<2x128xf32>
    %135 = arith.addf %134, %133 : vector<2x128xf32>
    %136 = arith.divf %134, %135 : vector<2x128xf32>
    %137 = vector.extract_strided_slice %131 {offsets = [0, 64], sizes = [2, 32], strides = [1, 1]} : vector<2x128xf32> to vector<2x32xf32>
    %138 = math.tanh %137 : vector<2x32xf32>
    %139 = vector.extract_strided_slice %136 {offsets = [0, 0], sizes = [2, 32], strides = [1, 1]} : vector<2x128xf32> to vector<2x32xf32>
    %140 = vector.extract_strided_slice %136 {offsets = [0, 32], sizes = [2, 32], strides = [1, 1]} : vector<2x128xf32> to vector<2x32xf32>
    %141 = vector.extract_strided_slice %136 {offsets = [0, 96], sizes = [2, 32], strides = [1, 1]} : vector<2x128xf32> to vector<2x32xf32>
    %142 = arith.mulf %140, %100 : vector<2x32xf32>
    %143 = arith.mulf %139, %138 : vector<2x32xf32>
    %144 = arith.addf %142, %143 : vector<2x32xf32>
    %145 = math.tanh %144 : vector<2x32xf32>
    %146 = arith.mulf %141, %145 : vector<2x32xf32>
    %147 = vector.extract_strided_slice %0 {offsets = [0, 3], sizes = [2, 1], strides = [1, 1]} : vector<2x8xf32> to vector<2x1xf32>
    %148 = vector.broadcast %147 : vector<2x1xf32> to vector<2x128xf32>
    %149 = vector.broadcast %1 : vector<1x128xf32> to vector<2x128xf32>
    %150 = arith.mulf %148, %149 : vector<2x128xf32>
    %151 = vector.broadcast %2 : vector<1x128xf32> to vector<2x128xf32>
    %152 = arith.addf %150, %151 : vector<2x128xf32>
    %153 = vector.extract_strided_slice %128 {offsets = [0, 0], sizes = [2, 128], strides = [1, 1]} : vector<2x256xf32> to vector<2x128xf32>
    %154 = arith.addf %152, %153 : vector<2x128xf32>
    %155 = arith.negf %154 : vector<2x128xf32>
    %156 = math.exp %155 : vector<2x128xf32>
    %cst_34 = arith.constant 1.000000e+00 : f32
    %157 = vector.broadcast %cst_34 : f32 to vector<2x128xf32>
    %158 = arith.addf %157, %156 : vector<2x128xf32>
    %159 = arith.divf %157, %158 : vector<2x128xf32>
    %160 = vector.extract_strided_slice %154 {offsets = [0, 64], sizes = [2, 32], strides = [1, 1]} : vector<2x128xf32> to vector<2x32xf32>
    %161 = math.tanh %160 : vector<2x32xf32>
    %162 = vector.extract_strided_slice %159 {offsets = [0, 0], sizes = [2, 32], strides = [1, 1]} : vector<2x128xf32> to vector<2x32xf32>
    %163 = vector.extract_strided_slice %159 {offsets = [0, 32], sizes = [2, 32], strides = [1, 1]} : vector<2x128xf32> to vector<2x32xf32>
    %164 = vector.extract_strided_slice %159 {offsets = [0, 96], sizes = [2, 32], strides = [1, 1]} : vector<2x128xf32> to vector<2x32xf32>
    %165 = arith.mulf %163, %123 : vector<2x32xf32>
    %166 = arith.mulf %162, %161 : vector<2x32xf32>
    %167 = arith.addf %165, %166 : vector<2x32xf32>
    %168 = math.tanh %167 : vector<2x32xf32>
    %169 = arith.mulf %164, %168 : vector<2x32xf32>
    %c0_35 = arith.constant 0 : index
    %c64 = arith.constant 64 : index
    %170 = vector.load %arg15[%c0_35, %c64] : memref<2x256xf32, #tpu.memory_space<vmem>>, vector<2x32xf32>
    tpu.vector_store %arg15[%c0_35, %c64], %146 {strides = array<i32>} : memref<2x256xf32, #tpu.memory_space<vmem>>, vector<2x32xf32>,
    %171 = tpu.concatenate %169, %146 in 1 : vector<2x32xf32>, vector<2x32xf32> -> vector<2x64xf32>
    %cst_36 = arith.constant dense<0.000000e+00> : vector<2x256xf32>
    %172 = tpu.matmul %171, %4, %cst_36 {dimension_numbers = #tpu.dot_dimension_numbers<[1], [0], [0], [1], [0, 0, 1, 1], [], []>} : vector<2x64xf32>, vector<64x256xf32>, vector<2x256xf32> -> vector<2x256xf32>
    %173 = vector.extract_strided_slice %172 {offsets = [0, 128], sizes = [2, 128], strides = [1, 1]} : vector<2x256xf32> to vector<2x128xf32>
    %174 = vector.broadcast %3 : vector<1x128xf32> to vector<2x128xf32>
    %175 = arith.addf %173, %174 : vector<2x128xf32>
    %176 = arith.negf %175 : vector<2x128xf32>
    %177 = math.exp %176 : vector<2x128xf32>
    %cst_37 = arith.constant 1.000000e+00 : f32
    %178 = vector.broadcast %cst_37 : f32 to vector<2x128xf32>
    %179 = arith.addf %178, %177 : vector<2x128xf32>
    %180 = arith.divf %178, %179 : vector<2x128xf32>
    %181 = vector.extract_strided_slice %175 {offsets = [0, 64], sizes = [2, 32], strides = [1, 1]} : vector<2x128xf32> to vector<2x32xf32>
    %182 = math.tanh %181 : vector<2x32xf32>
    %183 = vector.extract_strided_slice %180 {offsets = [0, 0], sizes = [2, 32], strides = [1, 1]} : vector<2x128xf32> to vector<2x32xf32>
    %184 = vector.extract_strided_slice %180 {offsets = [0, 32], sizes = [2, 32], strides = [1, 1]} : vector<2x128xf32> to vector<2x32xf32>
    %185 = vector.extract_strided_slice %180 {offsets = [0, 96], sizes = [2, 32], strides = [1, 1]} : vector<2x128xf32> to vector<2x32xf32>
    %186 = arith.mulf %184, %144 : vector<2x32xf32>
    %187 = arith.mulf %183, %182 : vector<2x32xf32>
    %188 = arith.addf %186, %187 : vector<2x32xf32>
    %189 = math.tanh %188 : vector<2x32xf32>
    %190 = arith.mulf %185, %189 : vector<2x32xf32>
    %191 = vector.extract_strided_slice %0 {offsets = [0, 4], sizes = [2, 1], strides = [1, 1]} : vector<2x8xf32> to vector<2x1xf32>
    %192 = vector.broadcast %191 : vector<2x1xf32> to vector<2x128xf32>
    %193 = vector.broadcast %1 : vector<1x128xf32> to vector<2x128xf32>
    %194 = arith.mulf %192, %193 : vector<2x128xf32>
    %195 = vector.broadcast %2 : vector<1x128xf32> to vector<2x128xf32>
    %196 = arith.addf %194, %195 : vector<2x128xf32>
    %197 = vector.extract_strided_slice %172 {offsets = [0, 0], sizes = [2, 128], strides = [1, 1]} : vector<2x256xf32> to vector<2x128xf32>
    %198 = arith.addf %196, %197 : vector<2x128xf32>
    %199 = arith.negf %198 : vector<2x128xf32>
    %200 = math.exp %199 : vector<2x128xf32>
    %cst_38 = arith.constant 1.000000e+00 : f32
    %201 = vector.broadcast %cst_38 : f32 to vector<2x128xf32>
    %202 = arith.addf %201, %200 : vector<2x128xf32>
    %203 = arith.divf %201, %202 : vector<2x128xf32>
    %204 = vector.extract_strided_slice %198 {offsets = [0, 64], sizes = [2, 32], strides = [1, 1]} : vector<2x128xf32> to vector<2x32xf32>
    %205 = math.tanh %204 : vector<2x32xf32>
    %206 = vector.extract_strided_slice %203 {offsets = [0, 0], sizes = [2, 32], strides = [1, 1]} : vector<2x128xf32> to vector<2x32xf32>
    %207 = vector.extract_strided_slice %203 {offsets = [0, 32], sizes = [2, 32], strides = [1, 1]} : vector<2x128xf32> to vector<2x32xf32>
    %208 = vector.extract_strided_slice %203 {offsets = [0, 96], sizes = [2, 32], strides = [1, 1]} : vector<2x128xf32> to vector<2x32xf32>
    %209 = arith.mulf %207, %167 : vector<2x32xf32>
    %210 = arith.mulf %206, %205 : vector<2x32xf32>
    %211 = arith.addf %209, %210 : vector<2x32xf32>
    %212 = math.tanh %211 : vector<2x32xf32>
    %213 = arith.mulf %208, %212 : vector<2x32xf32>
    %c0_39 = arith.constant 0 : index
    %c96 = arith.constant 96 : index
    %214 = vector.load %arg15[%c0_39, %c96] : memref<2x256xf32, #tpu.memory_space<vmem>>, vector<2x32xf32>
    tpu.vector_store %arg15[%c0_39, %c96], %190 {strides = array<i32>} : memref<2x256xf32, #tpu.memory_space<vmem>>, vector<2x32xf32>,
    %215 = tpu.concatenate %213, %190 in 1 : vector<2x32xf32>, vector<2x32xf32> -> vector<2x64xf32>
    %cst_40 = arith.constant dense<0.000000e+00> : vector<2x256xf32>
    %216 = tpu.matmul %215, %4, %cst_40 {dimension_numbers = #tpu.dot_dimension_numbers<[1], [0], [0], [1], [0, 0, 1, 1], [], []>} : vector<2x64xf32>, vector<64x256xf32>, vector<2x256xf32> -> vector<2x256xf32>
    %217 = vector.extract_strided_slice %216 {offsets = [0, 128], sizes = [2, 128], strides = [1, 1]} : vector<2x256xf32> to vector<2x128xf32>
    %218 = vector.broadcast %3 : vector<1x128xf32> to vector<2x128xf32>
    %219 = arith.addf %217, %218 : vector<2x128xf32>
    %220 = arith.negf %219 : vector<2x128xf32>
    %221 = math.exp %220 : vector<2x128xf32>
    %cst_41 = arith.constant 1.000000e+00 : f32
    %222 = vector.broadcast %cst_41 : f32 to vector<2x128xf32>
    %223 = arith.addf %222, %221 : vector<2x128xf32>
    %224 = arith.divf %222, %223 : vector<2x128xf32>
    %225 = vector.extract_strided_slice %219 {offsets = [0, 64], sizes = [2, 32], strides = [1, 1]} : vector<2x128xf32> to vector<2x32xf32>
    %226 = math.tanh %225 : vector<2x32xf32>
    %227 = vector.extract_strided_slice %224 {offsets = [0, 0], sizes = [2, 32], strides = [1, 1]} : vector<2x128xf32> to vector<2x32xf32>
    %228 = vector.extract_strided_slice %224 {offsets = [0, 32], sizes = [2, 32], strides = [1, 1]} : vector<2x128xf32> to vector<2x32xf32>
    %229 = vector.extract_strided_slice %224 {offsets = [0, 96], sizes = [2, 32], strides = [1, 1]} : vector<2x128xf32> to vector<2x32xf32>
    %230 = arith.mulf %228, %188 : vector<2x32xf32>
    %231 = arith.mulf %227, %226 : vector<2x32xf32>
    %232 = arith.addf %230, %231 : vector<2x32xf32>
    %233 = math.tanh %232 : vector<2x32xf32>
    %234 = arith.mulf %229, %233 : vector<2x32xf32>
    %235 = vector.extract_strided_slice %0 {offsets = [0, 5], sizes = [2, 1], strides = [1, 1]} : vector<2x8xf32> to vector<2x1xf32>
    %236 = vector.broadcast %235 : vector<2x1xf32> to vector<2x128xf32>
    %237 = vector.broadcast %1 : vector<1x128xf32> to vector<2x128xf32>
    %238 = arith.mulf %236, %237 : vector<2x128xf32>
    %239 = vector.broadcast %2 : vector<1x128xf32> to vector<2x128xf32>
    %240 = arith.addf %238, %239 : vector<2x128xf32>
    %241 = vector.extract_strided_slice %216 {offsets = [0, 0], sizes = [2, 128], strides = [1, 1]} : vector<2x256xf32> to vector<2x128xf32>
    %242 = arith.addf %240, %241 : vector<2x128xf32>
    %243 = arith.negf %242 : vector<2x128xf32>
    %244 = math.exp %243 : vector<2x128xf32>
    %cst_42 = arith.constant 1.000000e+00 : f32
    %245 = vector.broadcast %cst_42 : f32 to vector<2x128xf32>
    %246 = arith.addf %245, %244 : vector<2x128xf32>
    %247 = arith.divf %245, %246 : vector<2x128xf32>
    %248 = vector.extract_strided_slice %242 {offsets = [0, 64], sizes = [2, 32], strides = [1, 1]} : vector<2x128xf32> to vector<2x32xf32>
    %249 = math.tanh %248 : vector<2x32xf32>
    %250 = vector.extract_strided_slice %247 {offsets = [0, 0], sizes = [2, 32], strides = [1, 1]} : vector<2x128xf32> to vector<2x32xf32>
    %251 = vector.extract_strided_slice %247 {offsets = [0, 32], sizes = [2, 32], strides = [1, 1]} : vector<2x128xf32> to vector<2x32xf32>
    %252 = vector.extract_strided_slice %247 {offsets = [0, 96], sizes = [2, 32], strides = [1, 1]} : vector<2x128xf32> to vector<2x32xf32>
    %253 = arith.mulf %251, %211 : vector<2x32xf32>
    %254 = arith.mulf %250, %249 : vector<2x32xf32>
    %255 = arith.addf %253, %254 : vector<2x32xf32>
    %256 = math.tanh %255 : vector<2x32xf32>
    %257 = arith.mulf %252, %256 : vector<2x32xf32>
    %c0_43 = arith.constant 0 : index
    %c128 = arith.constant 128 : index
    %258 = vector.load %arg15[%c0_43, %c128] : memref<2x256xf32, #tpu.memory_space<vmem>>, vector<2x32xf32>
    tpu.vector_store %arg15[%c0_43, %c128], %234 {strides = array<i32>} : memref<2x256xf32, #tpu.memory_space<vmem>>, vector<2x32xf32>,
    %259 = tpu.concatenate %257, %234 in 1 : vector<2x32xf32>, vector<2x32xf32> -> vector<2x64xf32>
    %cst_44 = arith.constant dense<0.000000e+00> : vector<2x256xf32>
    %260 = tpu.matmul %259, %4, %cst_44 {dimension_numbers = #tpu.dot_dimension_numbers<[1], [0], [0], [1], [0, 0, 1, 1], [], []>} : vector<2x64xf32>, vector<64x256xf32>, vector<2x256xf32> -> vector<2x256xf32>
    %261 = vector.extract_strided_slice %260 {offsets = [0, 128], sizes = [2, 128], strides = [1, 1]} : vector<2x256xf32> to vector<2x128xf32>
    %262 = vector.broadcast %3 : vector<1x128xf32> to vector<2x128xf32>
    %263 = arith.addf %261, %262 : vector<2x128xf32>
    %264 = arith.negf %263 : vector<2x128xf32>
    %265 = math.exp %264 : vector<2x128xf32>
    %cst_45 = arith.constant 1.000000e+00 : f32
    %266 = vector.broadcast %cst_45 : f32 to vector<2x128xf32>
    %267 = arith.addf %266, %265 : vector<2x128xf32>
    %268 = arith.divf %266, %267 : vector<2x128xf32>
    %269 = vector.extract_strided_slice %263 {offsets = [0, 64], sizes = [2, 32], strides = [1, 1]} : vector<2x128xf32> to vector<2x32xf32>
    %270 = math.tanh %269 : vector<2x32xf32>
    %271 = vector.extract_strided_slice %268 {offsets = [0, 0], sizes = [2, 32], strides = [1, 1]} : vector<2x128xf32> to vector<2x32xf32>
    %272 = vector.extract_strided_slice %268 {offsets = [0, 32], sizes = [2, 32], strides = [1, 1]} : vector<2x128xf32> to vector<2x32xf32>
    %273 = vector.extract_strided_slice %268 {offsets = [0, 96], sizes = [2, 32], strides = [1, 1]} : vector<2x128xf32> to vector<2x32xf32>
    %274 = arith.mulf %272, %232 : vector<2x32xf32>
    %275 = arith.mulf %271, %270 : vector<2x32xf32>
    %276 = arith.addf %274, %275 : vector<2x32xf32>
    %277 = math.tanh %276 : vector<2x32xf32>
    %278 = arith.mulf %273, %277 : vector<2x32xf32>
    %279 = vector.extract_strided_slice %0 {offsets = [0, 6], sizes = [2, 1], strides = [1, 1]} : vector<2x8xf32> to vector<2x1xf32>
    %280 = vector.broadcast %279 : vector<2x1xf32> to vector<2x128xf32>
    %281 = vector.broadcast %1 : vector<1x128xf32> to vector<2x128xf32>
    %282 = arith.mulf %280, %281 : vector<2x128xf32>
    %283 = vector.broadcast %2 : vector<1x128xf32> to vector<2x128xf32>
    %284 = arith.addf %282, %283 : vector<2x128xf32>
    %285 = vector.extract_strided_slice %260 {offsets = [0, 0], sizes = [2, 128], strides = [1, 1]} : vector<2x256xf32> to vector<2x128xf32>
    %286 = arith.addf %284, %285 : vector<2x128xf32>
    %287 = arith.negf %286 : vector<2x128xf32>
    %288 = math.exp %287 : vector<2x128xf32>
    %cst_46 = arith.constant 1.000000e+00 : f32
    %289 = vector.broadcast %cst_46 : f32 to vector<2x128xf32>
    %290 = arith.addf %289, %288 : vector<2x128xf32>
    %291 = arith.divf %289, %290 : vector<2x128xf32>
    %292 = vector.extract_strided_slice %286 {offsets = [0, 64], sizes = [2, 32], strides = [1, 1]} : vector<2x128xf32> to vector<2x32xf32>
    %293 = math.tanh %292 : vector<2x32xf32>
    %294 = vector.extract_strided_slice %291 {offsets = [0, 0], sizes = [2, 32], strides = [1, 1]} : vector<2x128xf32> to vector<2x32xf32>
    %295 = vector.extract_strided_slice %291 {offsets = [0, 32], sizes = [2, 32], strides = [1, 1]} : vector<2x128xf32> to vector<2x32xf32>
    %296 = vector.extract_strided_slice %291 {offsets = [0, 96], sizes = [2, 32], strides = [1, 1]} : vector<2x128xf32> to vector<2x32xf32>
    %297 = arith.mulf %295, %255 : vector<2x32xf32>
    %298 = arith.mulf %294, %293 : vector<2x32xf32>
    %299 = arith.addf %297, %298 : vector<2x32xf32>
    %300 = math.tanh %299 : vector<2x32xf32>
    %301 = arith.mulf %296, %300 : vector<2x32xf32>
    %c0_47 = arith.constant 0 : index
    %c160 = arith.constant 160 : index
    %302 = vector.load %arg15[%c0_47, %c160] : memref<2x256xf32, #tpu.memory_space<vmem>>, vector<2x32xf32>
    tpu.vector_store %arg15[%c0_47, %c160], %278 {strides = array<i32>} : memref<2x256xf32, #tpu.memory_space<vmem>>, vector<2x32xf32>,
    %303 = tpu.concatenate %301, %278 in 1 : vector<2x32xf32>, vector<2x32xf32> -> vector<2x64xf32>
    %cst_48 = arith.constant dense<0.000000e+00> : vector<2x256xf32>
    %304 = tpu.matmul %303, %4, %cst_48 {dimension_numbers = #tpu.dot_dimension_numbers<[1], [0], [0], [1], [0, 0, 1, 1], [], []>} : vector<2x64xf32>, vector<64x256xf32>, vector<2x256xf32> -> vector<2x256xf32>
    %305 = vector.extract_strided_slice %304 {offsets = [0, 128], sizes = [2, 128], strides = [1, 1]} : vector<2x256xf32> to vector<2x128xf32>
    %306 = vector.broadcast %3 : vector<1x128xf32> to vector<2x128xf32>
    %307 = arith.addf %305, %306 : vector<2x128xf32>
    %308 = arith.negf %307 : vector<2x128xf32>
    %309 = math.exp %308 : vector<2x128xf32>
    %cst_49 = arith.constant 1.000000e+00 : f32
    %310 = vector.broadcast %cst_49 : f32 to vector<2x128xf32>
    %311 = arith.addf %310, %309 : vector<2x128xf32>
    %312 = arith.divf %310, %311 : vector<2x128xf32>
    %313 = vector.extract_strided_slice %307 {offsets = [0, 64], sizes = [2, 32], strides = [1, 1]} : vector<2x128xf32> to vector<2x32xf32>
    %314 = math.tanh %313 : vector<2x32xf32>
    %315 = vector.extract_strided_slice %312 {offsets = [0, 0], sizes = [2, 32], strides = [1, 1]} : vector<2x128xf32> to vector<2x32xf32>
    %316 = vector.extract_strided_slice %312 {offsets = [0, 32], sizes = [2, 32], strides = [1, 1]} : vector<2x128xf32> to vector<2x32xf32>
    %317 = vector.extract_strided_slice %312 {offsets = [0, 96], sizes = [2, 32], strides = [1, 1]} : vector<2x128xf32> to vector<2x32xf32>
    %318 = arith.mulf %316, %276 : vector<2x32xf32>
    %319 = arith.mulf %315, %314 : vector<2x32xf32>
    %320 = arith.addf %318, %319 : vector<2x32xf32>
    %321 = math.tanh %320 : vector<2x32xf32>
    %322 = arith.mulf %317, %321 : vector<2x32xf32>
    %323 = vector.extract_strided_slice %0 {offsets = [0, 7], sizes = [2, 1], strides = [1, 1]} : vector<2x8xf32> to vector<2x1xf32>
    %324 = vector.broadcast %323 : vector<2x1xf32> to vector<2x128xf32>
    %325 = vector.broadcast %1 : vector<1x128xf32> to vector<2x128xf32>
    %326 = arith.mulf %324, %325 : vector<2x128xf32>
    %327 = vector.broadcast %2 : vector<1x128xf32> to vector<2x128xf32>
    %328 = arith.addf %326, %327 : vector<2x128xf32>
    %329 = vector.extract_strided_slice %304 {offsets = [0, 0], sizes = [2, 128], strides = [1, 1]} : vector<2x256xf32> to vector<2x128xf32>
    %330 = arith.addf %328, %329 : vector<2x128xf32>
    %331 = arith.negf %330 : vector<2x128xf32>
    %332 = math.exp %331 : vector<2x128xf32>
    %cst_50 = arith.constant 1.000000e+00 : f32
    %333 = vector.broadcast %cst_50 : f32 to vector<2x128xf32>
    %334 = arith.addf %333, %332 : vector<2x128xf32>
    %335 = arith.divf %333, %334 : vector<2x128xf32>
    %336 = vector.extract_strided_slice %330 {offsets = [0, 64], sizes = [2, 32], strides = [1, 1]} : vector<2x128xf32> to vector<2x32xf32>
    %337 = math.tanh %336 : vector<2x32xf32>
    %338 = vector.extract_strided_slice %335 {offsets = [0, 0], sizes = [2, 32], strides = [1, 1]} : vector<2x128xf32> to vector<2x32xf32>
    %339 = vector.extract_strided_slice %335 {offsets = [0, 32], sizes = [2, 32], strides = [1, 1]} : vector<2x128xf32> to vector<2x32xf32>
    %340 = vector.extract_strided_slice %335 {offsets = [0, 96], sizes = [2, 32], strides = [1, 1]} : vector<2x128xf32> to vector<2x32xf32>
    %341 = arith.mulf %339, %299 : vector<2x32xf32>
    %342 = arith.mulf %338, %337 : vector<2x32xf32>
    %343 = arith.addf %341, %342 : vector<2x32xf32>
    %344 = math.tanh %343 : vector<2x32xf32>
    %345 = arith.mulf %340, %344 : vector<2x32xf32>
    %c0_51 = arith.constant 0 : index
    %c192 = arith.constant 192 : index
    %346 = vector.load %arg15[%c0_51, %c192] : memref<2x256xf32, #tpu.memory_space<vmem>>, vector<2x32xf32>
    tpu.vector_store %arg15[%c0_51, %c192], %322 {strides = array<i32>} : memref<2x256xf32, #tpu.memory_space<vmem>>, vector<2x32xf32>,
    %347 = tpu.concatenate %345, %322 in 1 : vector<2x32xf32>, vector<2x32xf32> -> vector<2x64xf32>
    %cst_52 = arith.constant dense<0.000000e+00> : vector<2x128xf32>
    %348 = tpu.matmul %347, %6, %cst_52 {dimension_numbers = #tpu.dot_dimension_numbers<[1], [0], [0], [1], [0, 0, 1, 1], [], []>} : vector<2x64xf32>, vector<64x128xf32>, vector<2x128xf32> -> vector<2x128xf32>
    %349 = vector.broadcast %3 : vector<1x128xf32> to vector<2x128xf32>
    %350 = arith.addf %348, %349 : vector<2x128xf32>
    %351 = arith.negf %350 : vector<2x128xf32>
    %352 = math.exp %351 : vector<2x128xf32>
    %cst_53 = arith.constant 1.000000e+00 : f32
    %353 = vector.broadcast %cst_53 : f32 to vector<2x128xf32>
    %354 = arith.addf %353, %352 : vector<2x128xf32>
    %355 = arith.divf %353, %354 : vector<2x128xf32>
    %356 = vector.extract_strided_slice %350 {offsets = [0, 64], sizes = [2, 32], strides = [1, 1]} : vector<2x128xf32> to vector<2x32xf32>
    %357 = math.tanh %356 : vector<2x32xf32>
    %358 = vector.extract_strided_slice %355 {offsets = [0, 0], sizes = [2, 32], strides = [1, 1]} : vector<2x128xf32> to vector<2x32xf32>
    %359 = vector.extract_strided_slice %355 {offsets = [0, 32], sizes = [2, 32], strides = [1, 1]} : vector<2x128xf32> to vector<2x32xf32>
    %360 = vector.extract_strided_slice %355 {offsets = [0, 96], sizes = [2, 32], strides = [1, 1]} : vector<2x128xf32> to vector<2x32xf32>
    %361 = arith.mulf %359, %320 : vector<2x32xf32>
    %362 = arith.mulf %358, %357 : vector<2x32xf32>
    %363 = arith.addf %361, %362 : vector<2x32xf32>
    %364 = math.tanh %363 : vector<2x32xf32>
    %365 = arith.mulf %360, %364 : vector<2x32xf32>
    %c0_54 = arith.constant 0 : index
    %c224 = arith.constant 224 : index
    %366 = vector.load %arg15[%c0_54, %c224] : memref<2x256xf32, #tpu.memory_space<vmem>>, vector<2x32xf32>
    tpu.vector_store %arg15[%c0_54, %c224], %365 {strides = array<i32>} : memref<2x256xf32, #tpu.memory_space<vmem>>, vector<2x32xf32>,
    %cst_55 = arith.constant 6.847000e-01 : f32
    %367 = vector.broadcast %cst_55 : f32 to vector<2x8xf32>
    %368 = arith.mulf %367, %0 : vector<2x8xf32>
    %cst_56 = arith.constant 0.322014421 : f32
    %369 = vector.broadcast %cst_56 : f32 to vector<2x8xf32>
    %370 = arith.addf %368, %369 : vector<2x8xf32>
    %cst_57 = arith.constant 7.132000e-01 : f32
    %371 = vector.broadcast %cst_57 : f32 to vector<2x8xf32>
    %372 = arith.mulf %371, %0 : vector<2x8xf32>
    %cst_58 = arith.constant 0.238066167 : f32
    %373 = vector.broadcast %cst_58 : f32 to vector<2x8xf32>
    %374 = arith.addf %372, %373 : vector<2x8xf32>
    %375 = vector.extract_strided_slice %370 {offsets = [0, 0], sizes = [2, 1], strides = [1, 1]} : vector<2x8xf32> to vector<2x1xf32>
    %376 = vector.extract_strided_slice %374 {offsets = [0, 0], sizes = [2, 1], strides = [1, 1]} : vector<2x8xf32> to vector<2x1xf32>
    %377 = arith.cmpf ole, %375, %15 : vector<2x1xf32>
    %cst_59 = arith.constant 1.000000e+00 : f32
    %cst_60 = arith.constant 0.000000e+00 : f32
    %378 = vector.broadcast %cst_59 : f32 to vector<2x1xf32>
    %379 = vector.broadcast %cst_60 : f32 to vector<2x1xf32>
    %380 = arith.select %377, %378, %379 : vector<2x1xi1>, vector<2x1xf32>
    %381 = arith.cmpf ole, %15, %376 : vector<2x1xf32>
    %cst_61 = arith.constant 1.000000e+00 : f32
    %cst_62 = arith.constant 0.000000e+00 : f32
    %382 = vector.broadcast %cst_61 : f32 to vector<2x1xf32>
    %383 = vector.broadcast %cst_62 : f32 to vector<2x1xf32>
    %384 = arith.select %381, %382, %383 : vector<2x1xi1>, vector<2x1xf32>
    %385 = arith.mulf %375, %380 : vector<2x1xf32>
    %386 = arith.mulf %376, %384 : vector<2x1xf32>
    %387 = arith.addf %385, %386 : vector<2x1xf32>
    %cst_63 = arith.constant 1.000000e+00 : f32
    %388 = vector.broadcast %cst_63 : f32 to vector<2x1xf32>
    %389 = arith.subf %388, %380 : vector<2x1xf32>
    %390 = arith.mulf %15, %389 : vector<2x1xf32>
    %cst_64 = arith.constant 1.000000e+00 : f32
    %391 = vector.broadcast %cst_64 : f32 to vector<2x1xf32>
    %392 = arith.subf %391, %384 : vector<2x1xf32>
    %393 = arith.mulf %390, %392 : vector<2x1xf32>
    %394 = arith.addf %387, %393 : vector<2x1xf32>
    %c0_65 = arith.constant 0 : index
    %c0_66 = arith.constant 0 : index
    %395 = vector.load %arg13[%c0_65, %c0_66] : memref<2x8xf32, #tpu.memory_space<vmem>>, vector<2x1xf32>
    tpu.vector_store %arg13[%c0_65, %c0_66], %394 {strides = array<i32>} : memref<2x8xf32, #tpu.memory_space<vmem>>, vector<2x1xf32>,
    %396 = vector.extract_strided_slice %370 {offsets = [0, 1], sizes = [2, 1], strides = [1, 1]} : vector<2x8xf32> to vector<2x1xf32>
    %397 = vector.extract_strided_slice %374 {offsets = [0, 1], sizes = [2, 1], strides = [1, 1]} : vector<2x8xf32> to vector<2x1xf32>
    %398 = arith.cmpf ole, %396, %394 : vector<2x1xf32>
    %cst_67 = arith.constant 1.000000e+00 : f32
    %cst_68 = arith.constant 0.000000e+00 : f32
    %399 = vector.broadcast %cst_67 : f32 to vector<2x1xf32>
    %400 = vector.broadcast %cst_68 : f32 to vector<2x1xf32>
    %401 = arith.select %398, %399, %400 : vector<2x1xi1>, vector<2x1xf32>
    %402 = arith.cmpf ole, %394, %397 : vector<2x1xf32>
    %cst_69 = arith.constant 1.000000e+00 : f32
    %cst_70 = arith.constant 0.000000e+00 : f32
    %403 = vector.broadcast %cst_69 : f32 to vector<2x1xf32>
    %404 = vector.broadcast %cst_70 : f32 to vector<2x1xf32>
    %405 = arith.select %402, %403, %404 : vector<2x1xi1>, vector<2x1xf32>
    %406 = arith.mulf %396, %401 : vector<2x1xf32>
    %407 = arith.mulf %397, %405 : vector<2x1xf32>
    %408 = arith.addf %406, %407 : vector<2x1xf32>
    %cst_71 = arith.constant 1.000000e+00 : f32
    %409 = vector.broadcast %cst_71 : f32 to vector<2x1xf32>
    %410 = arith.subf %409, %401 : vector<2x1xf32>
    %411 = arith.mulf %394, %410 : vector<2x1xf32>
    %cst_72 = arith.constant 1.000000e+00 : f32
    %412 = vector.broadcast %cst_72 : f32 to vector<2x1xf32>
    %413 = arith.subf %412, %405 : vector<2x1xf32>
    %414 = arith.mulf %411, %413 : vector<2x1xf32>
    %415 = arith.addf %408, %414 : vector<2x1xf32>
    %c0_73 = arith.constant 0 : index
    %c1_74 = arith.constant 1 : index
    %416 = vector.load %arg13[%c0_73, %c1_74] : memref<2x8xf32, #tpu.memory_space<vmem>>, vector<2x1xf32>
    tpu.vector_store %arg13[%c0_73, %c1_74], %415 {strides = array<i32>} : memref<2x8xf32, #tpu.memory_space<vmem>>, vector<2x1xf32>,
    %417 = vector.extract_strided_slice %370 {offsets = [0, 2], sizes = [2, 1], strides = [1, 1]} : vector<2x8xf32> to vector<2x1xf32>
    %418 = vector.extract_strided_slice %374 {offsets = [0, 2], sizes = [2, 1], strides = [1, 1]} : vector<2x8xf32> to vector<2x1xf32>
    %419 = arith.cmpf ole, %417, %415 : vector<2x1xf32>
    %cst_75 = arith.constant 1.000000e+00 : f32
    %cst_76 = arith.constant 0.000000e+00 : f32
    %420 = vector.broadcast %cst_75 : f32 to vector<2x1xf32>
    %421 = vector.broadcast %cst_76 : f32 to vector<2x1xf32>
    %422 = arith.select %419, %420, %421 : vector<2x1xi1>, vector<2x1xf32>
    %423 = arith.cmpf ole, %415, %418 : vector<2x1xf32>
    %cst_77 = arith.constant 1.000000e+00 : f32
    %cst_78 = arith.constant 0.000000e+00 : f32
    %424 = vector.broadcast %cst_77 : f32 to vector<2x1xf32>
    %425 = vector.broadcast %cst_78 : f32 to vector<2x1xf32>
    %426 = arith.select %423, %424, %425 : vector<2x1xi1>, vector<2x1xf32>
    %427 = arith.mulf %417, %422 : vector<2x1xf32>
    %428 = arith.mulf %418, %426 : vector<2x1xf32>
    %429 = arith.addf %427, %428 : vector<2x1xf32>
    %cst_79 = arith.constant 1.000000e+00 : f32
    %430 = vector.broadcast %cst_79 : f32 to vector<2x1xf32>
    %431 = arith.subf %430, %422 : vector<2x1xf32>
    %432 = arith.mulf %415, %431 : vector<2x1xf32>
    %cst_80 = arith.constant 1.000000e+00 : f32
    %433 = vector.broadcast %cst_80 : f32 to vector<2x1xf32>
    %434 = arith.subf %433, %426 : vector<2x1xf32>
    %435 = arith.mulf %432, %434 : vector<2x1xf32>
    %436 = arith.addf %429, %435 : vector<2x1xf32>
    %c0_81 = arith.constant 0 : index
    %c2 = arith.constant 2 : index
    %437 = vector.load %arg13[%c0_81, %c2] : memref<2x8xf32, #tpu.memory_space<vmem>>, vector<2x1xf32>
    tpu.vector_store %arg13[%c0_81, %c2], %436 {strides = array<i32>} : memref<2x8xf32, #tpu.memory_space<vmem>>, vector<2x1xf32>,
    %438 = vector.extract_strided_slice %370 {offsets = [0, 3], sizes = [2, 1], strides = [1, 1]} : vector<2x8xf32> to vector<2x1xf32>
    %439 = vector.extract_strided_slice %374 {offsets = [0, 3], sizes = [2, 1], strides = [1, 1]} : vector<2x8xf32> to vector<2x1xf32>
    %440 = arith.cmpf ole, %438, %436 : vector<2x1xf32>
    %cst_82 = arith.constant 1.000000e+00 : f32
    %cst_83 = arith.constant 0.000000e+00 : f32
    %441 = vector.broadcast %cst_82 : f32 to vector<2x1xf32>
    %442 = vector.broadcast %cst_83 : f32 to vector<2x1xf32>
    %443 = arith.select %440, %441, %442 : vector<2x1xi1>, vector<2x1xf32>
    %444 = arith.cmpf ole, %436, %439 : vector<2x1xf32>
    %cst_84 = arith.constant 1.000000e+00 : f32
    %cst_85 = arith.constant 0.000000e+00 : f32
    %445 = vector.broadcast %cst_84 : f32 to vector<2x1xf32>
    %446 = vector.broadcast %cst_85 : f32 to vector<2x1xf32>
    %447 = arith.select %444, %445, %446 : vector<2x1xi1>, vector<2x1xf32>
    %448 = arith.mulf %438, %443 : vector<2x1xf32>
    %449 = arith.mulf %439, %447 : vector<2x1xf32>
    %450 = arith.addf %448, %449 : vector<2x1xf32>
    %cst_86 = arith.constant 1.000000e+00 : f32
    %451 = vector.broadcast %cst_86 : f32 to vector<2x1xf32>
    %452 = arith.subf %451, %443 : vector<2x1xf32>
    %453 = arith.mulf %436, %452 : vector<2x1xf32>
    %cst_87 = arith.constant 1.000000e+00 : f32
    %454 = vector.broadcast %cst_87 : f32 to vector<2x1xf32>
    %455 = arith.subf %454, %447 : vector<2x1xf32>
    %456 = arith.mulf %453, %455 : vector<2x1xf32>
    %457 = arith.addf %450, %456 : vector<2x1xf32>
    %c0_88 = arith.constant 0 : index
    %c3 = arith.constant 3 : index
    %458 = vector.load %arg13[%c0_88, %c3] : memref<2x8xf32, #tpu.memory_space<vmem>>, vector<2x1xf32>
    tpu.vector_store %arg13[%c0_88, %c3], %457 {strides = array<i32>} : memref<2x8xf32, #tpu.memory_space<vmem>>, vector<2x1xf32>,
    %459 = vector.extract_strided_slice %370 {offsets = [0, 4], sizes = [2, 1], strides = [1, 1]} : vector<2x8xf32> to vector<2x1xf32>
    %460 = vector.extract_strided_slice %374 {offsets = [0, 4], sizes = [2, 1], strides = [1, 1]} : vector<2x8xf32> to vector<2x1xf32>
    %461 = arith.cmpf ole, %459, %457 : vector<2x1xf32>
    %cst_89 = arith.constant 1.000000e+00 : f32
    %cst_90 = arith.constant 0.000000e+00 : f32
    %462 = vector.broadcast %cst_89 : f32 to vector<2x1xf32>
    %463 = vector.broadcast %cst_90 : f32 to vector<2x1xf32>
    %464 = arith.select %461, %462, %463 : vector<2x1xi1>, vector<2x1xf32>
    %465 = arith.cmpf ole, %457, %460 : vector<2x1xf32>
    %cst_91 = arith.constant 1.000000e+00 : f32
    %cst_92 = arith.constant 0.000000e+00 : f32
    %466 = vector.broadcast %cst_91 : f32 to vector<2x1xf32>
    %467 = vector.broadcast %cst_92 : f32 to vector<2x1xf32>
    %468 = arith.select %465, %466, %467 : vector<2x1xi1>, vector<2x1xf32>
    %469 = arith.mulf %459, %464 : vector<2x1xf32>
    %470 = arith.mulf %460, %468 : vector<2x1xf32>
    %471 = arith.addf %469, %470 : vector<2x1xf32>
    %cst_93 = arith.constant 1.000000e+00 : f32
    %472 = vector.broadcast %cst_93 : f32 to vector<2x1xf32>
    %473 = arith.subf %472, %464 : vector<2x1xf32>
    %474 = arith.mulf %457, %473 : vector<2x1xf32>
    %cst_94 = arith.constant 1.000000e+00 : f32
    %475 = vector.broadcast %cst_94 : f32 to vector<2x1xf32>
    %476 = arith.subf %475, %468 : vector<2x1xf32>
    %477 = arith.mulf %474, %476 : vector<2x1xf32>
    %478 = arith.addf %471, %477 : vector<2x1xf32>
    %c0_95 = arith.constant 0 : index
    %c4 = arith.constant 4 : index
    %479 = vector.load %arg13[%c0_95, %c4] : memref<2x8xf32, #tpu.memory_space<vmem>>, vector<2x1xf32>
    tpu.vector_store %arg13[%c0_95, %c4], %478 {strides = array<i32>} : memref<2x8xf32, #tpu.memory_space<vmem>>, vector<2x1xf32>,
    %480 = vector.extract_strided_slice %370 {offsets = [0, 5], sizes = [2, 1], strides = [1, 1]} : vector<2x8xf32> to vector<2x1xf32>
    %481 = vector.extract_strided_slice %374 {offsets = [0, 5], sizes = [2, 1], strides = [1, 1]} : vector<2x8xf32> to vector<2x1xf32>
    %482 = arith.cmpf ole, %480, %478 : vector<2x1xf32>
    %cst_96 = arith.constant 1.000000e+00 : f32
    %cst_97 = arith.constant 0.000000e+00 : f32
    %483 = vector.broadcast %cst_96 : f32 to vector<2x1xf32>
    %484 = vector.broadcast %cst_97 : f32 to vector<2x1xf32>
    %485 = arith.select %482, %483, %484 : vector<2x1xi1>, vector<2x1xf32>
    %486 = arith.cmpf ole, %478, %481 : vector<2x1xf32>
    %cst_98 = arith.constant 1.000000e+00 : f32
    %cst_99 = arith.constant 0.000000e+00 : f32
    %487 = vector.broadcast %cst_98 : f32 to vector<2x1xf32>
    %488 = vector.broadcast %cst_99 : f32 to vector<2x1xf32>
    %489 = arith.select %486, %487, %488 : vector<2x1xi1>, vector<2x1xf32>
    %490 = arith.mulf %480, %485 : vector<2x1xf32>
    %491 = arith.mulf %481, %489 : vector<2x1xf32>
    %492 = arith.addf %490, %491 : vector<2x1xf32>
    %cst_100 = arith.constant 1.000000e+00 : f32
    %493 = vector.broadcast %cst_100 : f32 to vector<2x1xf32>
    %494 = arith.subf %493, %485 : vector<2x1xf32>
    %495 = arith.mulf %478, %494 : vector<2x1xf32>
    %cst_101 = arith.constant 1.000000e+00 : f32
    %496 = vector.broadcast %cst_101 : f32 to vector<2x1xf32>
    %497 = arith.subf %496, %489 : vector<2x1xf32>
    %498 = arith.mulf %495, %497 : vector<2x1xf32>
    %499 = arith.addf %492, %498 : vector<2x1xf32>
    %c0_102 = arith.constant 0 : index
    %c5 = arith.constant 5 : index
    %500 = vector.load %arg13[%c0_102, %c5] : memref<2x8xf32, #tpu.memory_space<vmem>>, vector<2x1xf32>
    tpu.vector_store %arg13[%c0_102, %c5], %499 {strides = array<i32>} : memref<2x8xf32, #tpu.memory_space<vmem>>, vector<2x1xf32>,
    %501 = vector.extract_strided_slice %370 {offsets = [0, 6], sizes = [2, 1], strides = [1, 1]} : vector<2x8xf32> to vector<2x1xf32>
    %502 = vector.extract_strided_slice %374 {offsets = [0, 6], sizes = [2, 1], strides = [1, 1]} : vector<2x8xf32> to vector<2x1xf32>
    %503 = arith.cmpf ole, %501, %499 : vector<2x1xf32>
    %cst_103 = arith.constant 1.000000e+00 : f32
    %cst_104 = arith.constant 0.000000e+00 : f32
    %504 = vector.broadcast %cst_103 : f32 to vector<2x1xf32>
    %505 = vector.broadcast %cst_104 : f32 to vector<2x1xf32>
    %506 = arith.select %503, %504, %505 : vector<2x1xi1>, vector<2x1xf32>
    %507 = arith.cmpf ole, %499, %502 : vector<2x1xf32>
    %cst_105 = arith.constant 1.000000e+00 : f32
    %cst_106 = arith.constant 0.000000e+00 : f32
    %508 = vector.broadcast %cst_105 : f32 to vector<2x1xf32>
    %509 = vector.broadcast %cst_106 : f32 to vector<2x1xf32>
    %510 = arith.select %507, %508, %509 : vector<2x1xi1>, vector<2x1xf32>
    %511 = arith.mulf %501, %506 : vector<2x1xf32>
    %512 = arith.mulf %502, %510 : vector<2x1xf32>
    %513 = arith.addf %511, %512 : vector<2x1xf32>
    %cst_107 = arith.constant 1.000000e+00 : f32
    %514 = vector.broadcast %cst_107 : f32 to vector<2x1xf32>
    %515 = arith.subf %514, %506 : vector<2x1xf32>
    %516 = arith.mulf %499, %515 : vector<2x1xf32>
    %cst_108 = arith.constant 1.000000e+00 : f32
    %517 = vector.broadcast %cst_108 : f32 to vector<2x1xf32>
    %518 = arith.subf %517, %510 : vector<2x1xf32>
    %519 = arith.mulf %516, %518 : vector<2x1xf32>
    %520 = arith.addf %513, %519 : vector<2x1xf32>
    %c0_109 = arith.constant 0 : index
    %c6 = arith.constant 6 : index
    %521 = vector.load %arg13[%c0_109, %c6] : memref<2x8xf32, #tpu.memory_space<vmem>>, vector<2x1xf32>
    tpu.vector_store %arg13[%c0_109, %c6], %520 {strides = array<i32>} : memref<2x8xf32, #tpu.memory_space<vmem>>, vector<2x1xf32>,
    %522 = vector.extract_strided_slice %370 {offsets = [0, 7], sizes = [2, 1], strides = [1, 1]} : vector<2x8xf32> to vector<2x1xf32>
    %523 = vector.extract_strided_slice %374 {offsets = [0, 7], sizes = [2, 1], strides = [1, 1]} : vector<2x8xf32> to vector<2x1xf32>
    %524 = arith.cmpf ole, %522, %520 : vector<2x1xf32>
    %cst_110 = arith.constant 1.000000e+00 : f32
    %cst_111 = arith.constant 0.000000e+00 : f32
    %525 = vector.broadcast %cst_110 : f32 to vector<2x1xf32>
    %526 = vector.broadcast %cst_111 : f32 to vector<2x1xf32>
    %527 = arith.select %524, %525, %526 : vector<2x1xi1>, vector<2x1xf32>
    %528 = arith.cmpf ole, %520, %523 : vector<2x1xf32>
    %cst_112 = arith.constant 1.000000e+00 : f32
    %cst_113 = arith.constant 0.000000e+00 : f32
    %529 = vector.broadcast %cst_112 : f32 to vector<2x1xf32>
    %530 = vector.broadcast %cst_113 : f32 to vector<2x1xf32>
    %531 = arith.select %528, %529, %530 : vector<2x1xi1>, vector<2x1xf32>
    %532 = arith.mulf %522, %527 : vector<2x1xf32>
    %533 = arith.mulf %523, %531 : vector<2x1xf32>
    %534 = arith.addf %532, %533 : vector<2x1xf32>
    %cst_114 = arith.constant 1.000000e+00 : f32
    %535 = vector.broadcast %cst_114 : f32 to vector<2x1xf32>
    %536 = arith.subf %535, %527 : vector<2x1xf32>
    %537 = arith.mulf %520, %536 : vector<2x1xf32>
    %cst_115 = arith.constant 1.000000e+00 : f32
    %538 = vector.broadcast %cst_115 : f32 to vector<2x1xf32>
    %539 = arith.subf %538, %531 : vector<2x1xf32>
    %540 = arith.mulf %537, %539 : vector<2x1xf32>
    %541 = arith.addf %534, %540 : vector<2x1xf32>
    %c0_116 = arith.constant 0 : index
    %c7 = arith.constant 7 : index
    %542 = vector.load %arg13[%c0_116, %c7] : memref<2x8xf32, #tpu.memory_space<vmem>>, vector<2x1xf32>
    tpu.vector_store %arg13[%c0_116, %c7], %541 {strides = array<i32>} : memref<2x8xf32, #tpu.memory_space<vmem>>, vector<2x1xf32>,
    %c0_117 = arith.constant 0 : index
    %c0_118 = arith.constant 0 : index
    %543 = vector.load %arg15[%c0_117, %c0_118] : memref<2x256xf32, #tpu.memory_space<vmem>>, vector<2x256xf32>
    %c0_119 = arith.constant 0 : index
    %c0_120 = arith.constant 0 : index
    %544 = vector.load %arg8[%c0_119, %c0_120] : memref<256x8xf32, #tpu.memory_space<vmem>>, vector<256x8xf32>
    %cst_121 = arith.constant dense<0.000000e+00> : vector<2x8xf32>
    %545 = tpu.matmul %543, %544, %cst_121 {dimension_numbers = #tpu.dot_dimension_numbers<[1], [0], [0], [1], [0, 0, 1, 1], [], []>} : vector<2x256xf32>, vector<256x8xf32>, vector<2x8xf32> -> vector<2x8xf32>
    %c0_122 = arith.constant 0 : index
    %c0_123 = arith.constant 0 : index
    %546 = vector.load %arg9[%c0_122, %c0_123] : memref<1x1xf32, #tpu.memory_space<vmem>>, vector<1x1xf32>
    %547 = vector.broadcast %546 : vector<1x1xf32> to vector<2x8xf32>
    %548 = arith.addf %545, %547 : vector<2x8xf32>
    %c0_124 = arith.constant 0 : index
    %c0_125 = arith.constant 0 : index
    %549 = vector.load %arg13[%c0_124, %c0_125] : memref<2x8xf32, #tpu.memory_space<vmem>>, vector<2x8xf32>
    %c0_126 = arith.constant 0 : index
    %c0_127 = arith.constant 0 : index
    %550 = vector.load %arg14[%c0_126, %c0_127] : memref<2x8xf32, #tpu.memory_space<vmem>>, vector<2x8xf32>
    tpu.vector_store %arg14[%c0_126, %c0_127], %548 {strides = array<i32>} : memref<2x8xf32, #tpu.memory_space<vmem>>, vector<2x8xf32>,
    %551 = arith.addf %548, %549 : vector<2x8xf32>
    %c0_128 = arith.constant 0 : index
    %c0_129 = arith.constant 0 : index
    %552 = vector.load %arg10[%c0_128, %c0_129] : memref<2x8xf32, #tpu.memory_space<vmem>>, vector<2x8xf32>
    tpu.vector_store %arg10[%c0_128, %c0_129], %551 {strides = array<i32>} : memref<2x8xf32, #tpu.memory_space<vmem>>, vector<2x8xf32>,
    %c0_130 = arith.constant 0 : index
    %c0_131 = arith.constant 0 : index
    %c0_132 = arith.constant 0 : index
    %553 = vector.load %arg11[%c0_130, %c0_131, %c0_132] : memref<2x2x32xf32, #tpu.memory_space<vmem>>, vector<1x2x32xf32>
    %554 = vector.shape_cast %553 : vector<1x2x32xf32> to vector<2x32xf32>
    %555 = vector.shape_cast %345 : vector<2x32xf32> to vector<1x2x32xf32>
    tpu.vector_store %arg11[%c0_130, %c0_131, %c0_132], %555 {strides = array<i32>} : memref<2x2x32xf32, #tpu.memory_space<vmem>>, vector<1x2x32xf32>,
    %c1_133 = arith.constant 1 : index
    %c0_134 = arith.constant 0 : index
    %c0_135 = arith.constant 0 : index
    %556 = vector.load %arg11[%c1_133, %c0_134, %c0_135] : memref<2x2x32xf32, #tpu.memory_space<vmem>>, vector<1x2x32xf32>
    %557 = vector.shape_cast %556 : vector<1x2x32xf32> to vector<2x32xf32>
    %558 = vector.shape_cast %365 : vector<2x32xf32> to vector<1x2x32xf32>
    tpu.vector_store %arg11[%c1_133, %c0_134, %c0_135], %558 {strides = array<i32>} : memref<2x2x32xf32, #tpu.memory_space<vmem>>, vector<1x2x32xf32>,
    %c0_136 = arith.constant 0 : index
    %c0_137 = arith.constant 0 : index
    %c0_138 = arith.constant 0 : index
    %559 = vector.load %arg12[%c0_136, %c0_137, %c0_138] : memref<2x2x32xf32, #tpu.memory_space<vmem>>, vector<1x2x32xf32>
    %560 = vector.shape_cast %559 : vector<1x2x32xf32> to vector<2x32xf32>
    %561 = vector.shape_cast %343 : vector<2x32xf32> to vector<1x2x32xf32>
    tpu.vector_store %arg12[%c0_136, %c0_137, %c0_138], %561 {strides = array<i32>} : memref<2x2x32xf32, #tpu.memory_space<vmem>>, vector<1x2x32xf32>,
    %c1_139 = arith.constant 1 : index
    %c0_140 = arith.constant 0 : index
    %c0_141 = arith.constant 0 : index
    %562 = vector.load %arg12[%c1_139, %c0_140, %c0_141] : memref<2x2x32xf32, #tpu.memory_space<vmem>>, vector<1x2x32xf32>
    %563 = vector.shape_cast %562 : vector<1x2x32xf32> to vector<2x32xf32>
    %564 = vector.shape_cast %363 : vector<2x32xf32> to vector<1x2x32xf32>
    tpu.vector_store %arg12[%c1_139, %c0_140, %c0_141], %564 {strides = array<i32>} : memref<2x2x32xf32, #tpu.memory_space<vmem>>, vector<1x2x32xf32>,
    return
  }
}

</mosaic_0001>

<llo_original>
// kernel: tpu_custom_call.1
$region0: #{tpu_custom_call.1}
  #allocation0 [shape = 'u32[]', space=smem, size = 0x4, offset = 0x4, fixed_abs, tag = 'smem constant byte address 0x4 - core index']
  #allocation1 [shape = 'u32[144,128]{1,0:T(1,128)}', space=vmem, size = 0x12000, scoped, tag = 'internal scratch']
  #allocation2 [shape = 'f32[2,256]{1,0:T(2,128)}', space=vmem, size = 0x800, scoped, tag = 'scratch operand']
  #allocation3 [shape = 'f32[1,1]{1,0:T(1,128)S(1)}', space=vmem, size = 0x200, scoped, tag = 'scoped memory for tpu_custom_call.1']
  %s0 = inlined_call_operand.vmem [shape: f32[2,8], index: 0, kind: input, shape index: {}]
  %s1 = inlined_call_operand.vmem [shape: f32[2,1], index: 1, kind: input, shape index: {}]
  %s2 = inlined_call_operand.vmem [shape: f32[2,2,32], index: 2, kind: input, shape index: {}]
  %s3 = inlined_call_operand.vmem [shape: f32[2,2,32], index: 3, kind: input, shape index: {}]
  %s4 = inlined_call_operand.vmem [shape: f32[64,256], index: 4, kind: input, shape index: {}]
  %s5 = inlined_call_operand.vmem [shape: f32[1,128], index: 5, kind: input, shape index: {}]
  %s6 = inlined_call_operand.vmem [shape: f32[1,128], index: 6, kind: input, shape index: {}]
  %s7 = inlined_call_operand.vmem [shape: f32[1,128], index: 7, kind: input, shape index: {}]
  %s8 = inlined_call_operand.vmem [shape: f32[256,8], index: 8, kind: input, shape index: {}]
  %s9 = inlined_call_operand.<no memory space> [shape: f32[1,1], index: 9, kind: input, shape index: {}]
  %s10 = inlined_call_operand.hbm [shape: f32[2,8], index: 10, kind: output, shape index: {0}]
  %s11 = inlined_call_operand.hbm [shape: f32[2,2,32], index: 11, kind: output, shape index: {1}]
  %s12 = inlined_call_operand.hbm [shape: f32[2,2,32], index: 12, kind: output, shape index: {2}]
  %s13 = inlined_call_operand.hbm [shape: f32[2,8], index: 13, kind: output, shape index: {3}]
  %s14 = inlined_call_operand.hbm [shape: f32[2,8], index: 14, kind: output, shape index: {4}]
  %15 = xla_tuple %s10, %s11, %s12, %s13, %s14
  %s16 = sld [smem:[#allocation0]]
  $region82: #{tpu_custom_call.1} parent=0
    _
  %s18 = ssub.s32 1, %s16
  %s19 = scalar_select 0, %s18, %s16
  %v20 = vstv %s9
  %21 = vst [vmem:[#allocation3] sm:$0x1] %v20
  $region1: #{tpu_custom_call.1} parent=0
    #allocation4 [shape = 'u8[1024]{0}', space=vmem, size = 0x400, scoped, tag = 'output window, operand 0, single buffered']
    #allocation5 [shape = 's32[1]{0}', space=sflag, size = 0x4, scoped, tag = 'scoped memory for tpu_custom_call.1']
    #allocation6 [shape = 'u8[2048]{0}', space=vmem, size = 0x800, scoped, tag = 'output window, operand 1, single buffered']
    #allocation7 [shape = 's32[1]{0}', space=sflag, size = 0x4, scoped, tag = 'scoped memory for tpu_custom_call.1']
    #allocation8 [shape = 'u8[2048]{0}', space=vmem, size = 0x800, scoped, tag = 'output window, operand 2, single buffered']
    #allocation9 [shape = 'u8[1024]{0}', space=vmem, size = 0x400, scoped, tag = 'output window, operand 3, single buffered']
    #allocation10 [shape = 's32[1]{0}', space=sflag, size = 0x4, scoped, tag = 'scoped memory for tpu_custom_call.1']
    #allocation11 [shape = 'u8[1024]{0}', space=vmem, size = 0x400, scoped, tag = 'output window, operand 4, single buffered']
    %22 = vsyncpa [#allocation5], 0
    %23 = vsyncpa [#allocation7], 0
    %24 = vsyncpa [#allocation10], 0
    // Predicated region
    $region2: #{tpu_custom_call.1} parent=1 // pred_check
      _
    $region3: #{tpu_custom_call.1} parent=1 // pred_check_branch
      %26 = sbr.rel (0) target = $region5
    $region4: #{tpu_custom_call.1} parent=1 // pred_region
      _
    $region5: #{tpu_custom_call.1} parent=1 // pred_fallthru
      _
    // Predicated region
    $region6: #{tpu_custom_call.1} parent=1 // pred_check
      _
    $region7: #{tpu_custom_call.1} parent=1 // pred_check_branch
      %28 = sbr.rel (0) target = $region9
    $region8: #{tpu_custom_call.1} parent=1 // pred_region
      _
    $region9: #{tpu_custom_call.1} parent=1 // pred_fallthru
      _
    // Predicated region
    $region10: #{tpu_custom_call.1} parent=1 // pred_check
      _
    $region11: #{tpu_custom_call.1} parent=1 // pred_check_branch
      %30 = sbr.rel (0) target = $region13
    $region12: #{tpu_custom_call.1} parent=1 // pred_region
      _
    $region13: #{tpu_custom_call.1} parent=1 // pred_fallthru
      _
    // Predicated region
    $region14: #{tpu_custom_call.1} parent=1 // pred_check
      _
    $region15: #{tpu_custom_call.1} parent=1 // pred_check_branch
      %32 = sbr.rel (0) target = $region17
    $region16: #{tpu_custom_call.1} parent=1 // pred_region
      _
    $region17: #{tpu_custom_call.1} parent=1 // pred_fallthru
      _
    // Predicated region
    $region18: #{tpu_custom_call.1} parent=1 // pred_check
      _
    $region19: #{tpu_custom_call.1} parent=1 // pred_check_branch
      %34 = sbr.rel (0) target = $region21
    $region20: #{tpu_custom_call.1} parent=1 // pred_region
      _
    $region21: #{tpu_custom_call.1} parent=1 // pred_fallthru
      _
    // Predicated region
    $region22: #{tpu_custom_call.1} parent=1 // pred_check
      _
    $region23: #{tpu_custom_call.1} parent=1 // pred_check_branch
      %36 = sbr.rel (0) target = $region25
    $region24: #{tpu_custom_call.1} parent=1 // pred_region
      _
    $region25: #{tpu_custom_call.1} parent=1 // pred_fallthru
      _
    // Predicated region
    $region26: #{tpu_custom_call.1} parent=1 // pred_check
      _
    $region27: #{tpu_custom_call.1} parent=1 // pred_check_branch
      %38 = sbr.rel (0) target = $region29
    $region28: #{tpu_custom_call.1} parent=1 // pred_region
      _
    $region29: #{tpu_custom_call.1} parent=1 // pred_fallthru
      _
    // Predicated region
    $region30: #{tpu_custom_call.1} parent=1 // pred_check
      _
    $region31: #{tpu_custom_call.1} parent=1 // pred_check_branch
      %40 = sbr.rel (0) target = $region33
    $region32: #{tpu_custom_call.1} parent=1 // pred_region
      _
    $region33: #{tpu_custom_call.1} parent=1 // pred_fallthru
      _
    // Predicated region
    $region34: #{tpu_custom_call.1} parent=1 // pred_check
      _
    $region35: #{tpu_custom_call.1} parent=1 // pred_check_branch
      %42 = sbr.rel (0) target = $region37
    $region36: #{tpu_custom_call.1} parent=1 // pred_region
      _
    $region37: #{tpu_custom_call.1} parent=1 // pred_fallthru
      _
    // Predicated region
    $region38: #{tpu_custom_call.1} parent=1 // pred_check
      _
    $region39: #{tpu_custom_call.1} parent=1 // pred_check_branch
      %44 = sbr.rel (0) target = $region41
    $region40: #{tpu_custom_call.1} parent=1 // pred_region
      _
    $region41: #{tpu_custom_call.1} parent=1 // pred_fallthru
      _
    %v45 = vld [vmem:[%s0] sm:$0x3]
    %v46 = vld [vmem:[%s5] sm:$0x1]
    %v47 = vld [vmem:[%s6] sm:$0x1]
    %v48 = vld [vmem:[%s7] sm:$0x1]
    %v49 = vld [vmem:[%s4] sm:$0xff]
    %v50 = vld [vmem:[%s4 + $0x8] sm:$0xff]
    %v51 = vld [vmem:[%s4 + $0x10] sm:$0xff]
    %v52 = vld [vmem:[%s4 + $0x18] sm:$0xff]
    %v53 = vld [vmem:[%s4 + $0x20] sm:$0xff]
    %v54 = vld [vmem:[%s4 + $0x28] sm:$0xff]
    %v55 = vld [vmem:[%s4 + $0x30] sm:$0xff]
    %v56 = vld [vmem:[%s4 + $0x38] sm:$0xff]
    %v57 = vld [vmem:[%s4 + $0x40] sm:$0xff]
    %v58 = vld [vmem:[%s4 + $0x48] sm:$0xff]
    %v59 = vld [vmem:[%s4 + $0x50] sm:$0xff]
    %v60 = vld [vmem:[%s4 + $0x58] sm:$0xff]
    %v61 = vld [vmem:[%s4 + $0x60] sm:$0xff]
    %v62 = vld [vmem:[%s4 + $0x68] sm:$0xff]
    %v63 = vld [vmem:[%s4 + $0x70] sm:$0xff]
    %v64 = vld [vmem:[%s4 + $0x78] sm:$0xff]
    %v65 = vld [vmem:[%s2] sm:$0x3]
    %s66 = scalar_lea.vmem %s2, 2
    %v67 = vld [vmem:[%s66] sm:$0x3]
    %v68 = vld [vmem:[%s3] sm:$0x3]
    %s69 = scalar_lea.vmem %s3, 2
    %v70 = vld [vmem:[%s69] sm:$0x3]
    %v71 = vld [vmem:[%s1] sm:$0x3]
    %73 = vset.pattern.permute.xlu0 0
    %74 = vperm.xlu0 %73, %v45
    %v75 = vpop.permute.xlu0 %74
    %v78 = vlaneseq
    %v79 = vshrl.u32 %v78, 7
    %v80 = vsub.s32 0, %v79
    %v81 = vrot.slane %v46, %v80
    %v83 = vmul.f32 %v75, %v81
    %v85 = vlaneseq
    %v86 = vshrl.u32 %v85, 7
    %v87 = vsub.s32 0, %v86
    %v88 = vrot.slane %v47, %v87
    %v90 = vadd.f32 %v83, %v88
    %vm91 = vcmask 261120
    %v93 = vsel %vm91, %v65, 0
    %95 = vmatprep.subr.mxu0 0.0
    %96 = vmatpush1.msra.mxu0 0.0
    %97 = vmatprep.subr.mxu0 0.0
    %98 = vmatpush1.msra.mxu0 0.0
    %99 = vmatprep.subr.mxu0 0.0
    %100 = vmatpush1.msra.mxu0 0.0
    %101 = vmatprep.subr.mxu0 0.0
    %102 = vmatpush1.msra.mxu0 0.0
    %103 = vmatprep.subr.mxu0 0.0
    %104 = vmatpush1.msra.mxu0 0.0
    %105 = vmatprep.subr.mxu0 0.0
    %106 = vmatpush1.msra.mxu0 0.0
    %107 = vmatprep.subr.mxu0 0.0
    %108 = vmatpush1.msra.mxu0 0.0
    %109 = vmatprep.subr.mxu0 0.0
    %110 = vmatpush1.msra.mxu0 0.0
    %111 = vmatprep.subr.mxu0 0.0
    %112 = vmatpush1.msra.mxu0 0.0
    %113 = vmatprep.subr.mxu0 0.0
    %114 = vmatpush1.msra.mxu0 0.0
    %115 = vmatprep.subr.mxu0 0.0
    %116 = vmatpush1.msra.mxu0 0.0
    %117 = vmatprep.subr.mxu0 0.0
    %118 = vmatpush1.msra.mxu0 0.0
    %119 = vmatprep.subr.mxu0 0.0
    %120 = vmatpush1.msra.mxu0 %v55
    %121 = vmatprep.subr.mxu0 0.0
    %122 = vmatpush1.msra.mxu0 %v53
    %123 = vmatprep.subr.mxu0 0.0
    %124 = vmatpush1.msra.mxu0 %v51
    %125 = vmatprep.subr.mxu0 0.0
    %126 = vmatpush1.msra.mxu0 %v49
    %127 = vmatprep.subr.mxu0 0.0
    %128 = vmatpush2.msra.mxu0 0.0
    %129 = vmatprep.subr.mxu0 0.0
    %130 = vmatpush2.msra.mxu0 0.0
    %131 = vmatprep.subr.mxu0 0.0
    %132 = vmatpush2.msra.mxu0 0.0
    %133 = vmatprep.subr.mxu0 0.0
    %134 = vmatpush2.msra.mxu0 0.0
    %135 = vmatprep.subr.mxu0 0.0
    %136 = vmatpush2.msra.mxu0 0.0
    %137 = vmatprep.subr.mxu0 0.0
    %138 = vmatpush2.msra.mxu0 0.0
    %139 = vmatprep.subr.mxu0 0.0
    %140 = vmatpush2.msra.mxu0 0.0
    %141 = vmatprep.subr.mxu0 0.0
    %142 = vmatpush2.msra.mxu0 0.0
    %143 = vmatprep.subr.mxu0 0.0
    %144 = vmatpush2.msra.mxu0 0.0
    %145 = vmatprep.subr.mxu0 0.0
    %146 = vmatpush2.msra.mxu0 0.0
    %147 = vmatprep.subr.mxu0 0.0
    %148 = vmatpush2.msra.mxu0 0.0
    %149 = vmatprep.subr.mxu0 0.0
    %150 = vmatpush2.msra.mxu0 0.0
    %151 = vmatprep.subr.mxu0 0.0
    %152 = vmatpush2.msra.mxu0 0.0
    %153 = vmatprep.subr.mxu0 0.0
    %154 = vmatpush2.msra.mxu0 0.0
    %155 = vmatprep.subr.mxu0 0.0
    %156 = vmatpush2.msra.mxu0 0.0
    %157 = vmatprep.subr.mxu0 0.0
    %158 = vmatpush2.msra.mxu0 0.0
    %159 = vmatprep.mubr.f32.mxu0 0.0
    %160 = vmatmul.mubr.f32.gmra.mxu0 %v93
    %v161 = vpop.f32.mrf.mxu0
    %v162 = vadd.f32 0.0, %v161
    %v163 = vpop.f32.mrf.mxu0
    %164 = vdwg.mxu0
    %v165 = vadd.f32 %v90, %v162
    %v166 = vxor.u32 %v165, 2147483648
    %v167 = vmul.f32 %v166, 1.442695
    %v168 = vpow.pop %v167
    %v169 = vadd.f32 %v168, 1.0
    %v170 = vrcp.pop %v169
    %v171 = vmul.f32 1.0, %v170
    %v172 = vtanh.pop %v165
    %174 = vrot.lane.b32.xlu0 %v68, 32
    %v175 = vpop.permute.xlu0 %174
    %v177 = vmul.f32 %v171, %v175
    %179 = vrot.lane.b32.xlu0 %v172, 64
    %v180 = vpop.permute.xlu0 %179
    %v182 = vmul.f32 %v171, %v180
    %184 = vrot.lane.b32.xlu0 %v182, 32
    %v185 = vpop.permute.xlu0 %184
    %v187 = vadd.f32 %v177, %v185
    %v188 = vtanh.pop %v187
    %190 = vrot.lane.b32.xlu0 %v188, 64
    %v191 = vpop.permute.xlu0 %190
    %v193 = vmul.f32 %v171, %v191
    %195 = vrot.lane.b32.xlu0 %v193, 32
    %v196 = vpop.permute.xlu0 %195
    %199 = vrot.lane.b32.xlu0 %v67, 32
    %v200 = vpop.permute.xlu0 %199
    %v202 = vsel %vm91, %v196, %v200
    %vm203 = vcmask 523264
    %v205 = vsel %vm203, %v202, 0
    %207 = vmatprep.subr.mxu0 0.0
    %208 = vmatpush1.msra.mxu0 0.0
    %209 = vmatprep.subr.mxu0 0.0
    %210 = vmatpush1.msra.mxu0 0.0
    %211 = vmatprep.subr.mxu0 0.0
    %212 = vmatpush1.msra.mxu0 0.0
    %213 = vmatprep.subr.mxu0 0.0
    %214 = vmatpush1.msra.mxu0 0.0
    %215 = vmatprep.subr.mxu0 0.0
    %216 = vmatpush1.msra.mxu0 0.0
    %217 = vmatprep.subr.mxu0 0.0
    %218 = vmatpush1.msra.mxu0 0.0
    %219 = vmatprep.subr.mxu0 0.0
    %220 = vmatpush1.msra.mxu0 0.0
    %221 = vmatprep.subr.mxu0 0.0
    %222 = vmatpush1.msra.mxu0 0.0
    %223 = vmatprep.subr.mxu0 %v64
    %224 = vmatpush1.msra.mxu0 %v63
    %225 = vmatprep.subr.mxu0 %v62
    %226 = vmatpush1.msra.mxu0 %v61
    %227 = vmatprep.subr.mxu0 %v60
    %228 = vmatpush1.msra.mxu0 %v59
    %229 = vmatprep.subr.mxu0 %v58
    %230 = vmatpush1.msra.mxu0 %v57
    %231 = vmatprep.subr.mxu0 %v56
    %232 = vmatpush1.msra.mxu0 %v55
    %233 = vmatprep.subr.mxu0 %v54
    %234 = vmatpush1.msra.mxu0 %v53
    %235 = vmatprep.subr.mxu0 %v52
    %236 = vmatpush1.msra.mxu0 %v51
    %237 = vmatprep.subr.mxu0 %v50
    %238 = vmatpush1.msra.mxu0 %v49
    %239 = vmatprep.subr.mxu0 0.0
    %240 = vmatpush2.msra.mxu0 0.0
    %241 = vmatprep.subr.mxu0 0.0
    %242 = vmatpush2.msra.mxu0 0.0
    %243 = vmatprep.subr.mxu0 0.0
    %244 = vmatpush2.msra.mxu0 0.0
    %245 = vmatprep.subr.mxu0 0.0
    %246 = vmatpush2.msra.mxu0 0.0
    %247 = vmatprep.subr.mxu0 0.0
    %248 = vmatpush2.msra.mxu0 0.0
    %249 = vmatprep.subr.mxu0 0.0
    %250 = vmatpush2.msra.mxu0 0.0
    %251 = vmatprep.subr.mxu0 0.0
    %252 = vmatpush2.msra.mxu0 0.0
    %253 = vmatprep.subr.mxu0 0.0
    %254 = vmatpush2.msra.mxu0 0.0
    %255 = vmatprep.subr.mxu0 0.0
    %256 = vmatpush2.msra.mxu0 0.0
    %257 = vmatprep.subr.mxu0 0.0
    %258 = vmatpush2.msra.mxu0 0.0
    %259 = vmatprep.subr.mxu0 0.0
    %260 = vmatpush2.msra.mxu0 0.0
    %261 = vmatprep.subr.mxu0 0.0
    %262 = vmatpush2.msra.mxu0 0.0
    %263 = vmatprep.subr.mxu0 0.0
    %264 = vmatpush2.msra.mxu0 0.0
    %265 = vmatprep.subr.mxu0 0.0
    %266 = vmatpush2.msra.mxu0 0.0
    %267 = vmatprep.subr.mxu0 0.0
    %268 = vmatpush2.msra.mxu0 0.0
    %269 = vmatprep.subr.mxu0 0.0
    %270 = vmatpush2.msra.mxu0 0.0
    %271 = vmatprep.mubr.f32.mxu0 0.0
    %272 = vmatmul.mubr.f32.gmra.mxu0 %v205
    %v273 = vpop.f32.mrf.mxu0
    %v274 = vadd.f32 0.0, %v273
    %v275 = vpop.f32.mrf.mxu0
    %v276 = vadd.f32 0.0, %v275
    %277 = vdwg.mxu0
    %v279 = vlaneseq
    %v280 = vshrl.u32 %v279, 7
    %v281 = vsub.s32 0, %v280
    %v282 = vrot.slane %v48, %v281
    %v284 = vadd.f32 %v276, %v282
    %v285 = vxor.u32 %v284, 2147483648
    %v286 = vmul.f32 %v285, 1.442695
    %v287 = vpow.pop %v286
    %v288 = vadd.f32 %v287, 1.0
    %v289 = vrcp.pop %v288
    %v290 = vmul.f32 1.0, %v289
    %v291 = vtanh.pop %v284
    %293 = vrot.lane.b32.xlu0 %v70, 32
    %v294 = vpop.permute.xlu0 %293
    %v296 = vmul.f32 %v290, %v294
    %298 = vrot.lane.b32.xlu0 %v291, 64
    %v299 = vpop.permute.xlu0 %298
    %v301 = vmul.f32 %v290, %v299
    %303 = vrot.lane.b32.xlu0 %v301, 32
    %v304 = vpop.permute.xlu0 %303
    %v306 = vadd.f32 %v296, %v304
    %v307 = vtanh.pop %v306
    %309 = vrot.lane.b32.xlu0 %v307, 64
    %v310 = vpop.permute.xlu0 %309
    %v312 = vmul.f32 %v290, %v310
    %313 = vset.pattern.permute.xlu0 1
    %314 = vperm.xlu0 %313, %v45
    %v315 = vpop.permute.xlu0 %314
    %v317 = vmul.f32 %v315, %v81
    %v318 = vadd.f32 %v317, %v88
    %v319 = vadd.f32 %v318, %v274
    %v320 = vxor.u32 %v319, 2147483648
    %v321 = vmul.f32 %v320, 1.442695
    %v322 = vpow.pop %v321
    %v323 = vadd.f32 %v322, 1.0
    %v324 = vrcp.pop %v323
    %v325 = vmul.f32 1.0, %v324
    %v326 = vtanh.pop %v319
    %v327 = vmul.f32 %v325, %v187
    %329 = vrot.lane.b32.xlu0 %v326, 64
    %v330 = vpop.permute.xlu0 %329
    %v332 = vmul.f32 %v325, %v330
    %334 = vrot.lane.b32.xlu0 %v332, 32
    %v335 = vpop.permute.xlu0 %334
    %v337 = vadd.f32 %v327, %v335
    %v338 = vtanh.pop %v337
    %340 = vrot.lane.b32.xlu0 %v338, 64
    %v341 = vpop.permute.xlu0 %340
    %v343 = vmul.f32 %v325, %v341
    %v346 = vunpack.c.l.s4 1983009808
    %v347 = vunpack.c.0.s8 %v346
    %v348 = vlaneseq
    %v349 = vshrl.u32 %v348, 7
    %v350 = vsub.s32 %v347, %v349
    %v351 = vrot.slane %v312, %v350
    %352 = vrot.lane.b32.xlu0 %v351, 32
    %v353 = vpop.permute.xlu0 %352
    %vm355 = vcmask 254976
    %356 = vst.msk [vmem:[#allocation2] sm:$0x3] %vm355, %v353
    %358 = vrot.lane.b32.xlu0 %v343, 32
    %v359 = vpop.permute.xlu0 %358
    %361 = vrot.lane.b32.xlu0 %v312, 64
    %v362 = vpop.permute.xlu0 %361
    %v364 = vsel %vm91, %v359, %v362
    %v366 = vsel %vm203, %v364, 0
    %368 = vmatprep.subr.mxu0 0.0
    %369 = vmatpush1.msra.mxu0 0.0
    %370 = vmatprep.subr.mxu0 0.0
    %371 = vmatpush1.msra.mxu0 0.0
    %372 = vmatprep.subr.mxu0 0.0
    %373 = vmatpush1.msra.mxu0 0.0
    %374 = vmatprep.subr.mxu0 0.0
    %375 = vmatpush1.msra.mxu0 0.0
    %376 = vmatprep.subr.mxu0 0.0
    %377 = vmatpush1.msra.mxu0 0.0
    %378 = vmatprep.subr.mxu0 0.0
    %379 = vmatpush1.msra.mxu0 0.0
    %380 = vmatprep.subr.mxu0 0.0
    %381 = vmatpush1.msra.mxu0 0.0
    %382 = vmatprep.subr.mxu0 0.0
    %383 = vmatpush1.msra.mxu0 0.0
    %384 = vmatprep.subr.mxu0 %v64
    %385 = vmatpush1.msra.mxu0 %v63
    %386 = vmatprep.subr.mxu0 %v62
    %387 = vmatpush1.msra.mxu0 %v61
    %388 = vmatprep.subr.mxu0 %v60
    %389 = vmatpush1.msra.mxu0 %v59
    %390 = vmatprep.subr.mxu0 %v58
    %391 = vmatpush1.msra.mxu0 %v57
    %392 = vmatprep.subr.mxu0 %v56
    %393 = vmatpush1.msra.mxu0 %v55
    %394 = vmatprep.subr.mxu0 %v54
    %395 = vmatpush1.msra.mxu0 %v53
    %396 = vmatprep.subr.mxu0 %v52
    %397 = vmatpush1.msra.mxu0 %v51
    %398 = vmatprep.subr.mxu0 %v50
    %399 = vmatpush1.msra.mxu0 %v49
    %400 = vmatprep.subr.mxu0 0.0
    %401 = vmatpush2.msra.mxu0 0.0
    %402 = vmatprep.subr.mxu0 0.0
    %403 = vmatpush2.msra.mxu0 0.0
    %404 = vmatprep.subr.mxu0 0.0
    %405 = vmatpush2.msra.mxu0 0.0
    %406 = vmatprep.subr.mxu0 0.0
    %407 = vmatpush2.msra.mxu0 0.0
    %408 = vmatprep.subr.mxu0 0.0
    %409 = vmatpush2.msra.mxu0 0.0
    %410 = vmatprep.subr.mxu0 0.0
    %411 = vmatpush2.msra.mxu0 0.0
    %412 = vmatprep.subr.mxu0 0.0
    %413 = vmatpush2.msra.mxu0 0.0
    %414 = vmatprep.subr.mxu0 0.0
    %415 = vmatpush2.msra.mxu0 0.0
    %416 = vmatprep.subr.mxu0 0.0
    %417 = vmatpush2.msra.mxu0 0.0
    %418 = vmatprep.subr.mxu0 0.0
    %419 = vmatpush2.msra.mxu0 0.0
    %420 = vmatprep.subr.mxu0 0.0
    %421 = vmatpush2.msra.mxu0 0.0
    %422 = vmatprep.subr.mxu0 0.0
    %423 = vmatpush2.msra.mxu0 0.0
    %424 = vmatprep.subr.mxu0 0.0
    %425 = vmatpush2.msra.mxu0 0.0
    %426 = vmatprep.subr.mxu0 0.0
    %427 = vmatpush2.msra.mxu0 0.0
    %428 = vmatprep.subr.mxu0 0.0
    %429 = vmatpush2.msra.mxu0 0.0
    %430 = vmatprep.subr.mxu0 0.0
    %431 = vmatpush2.msra.mxu0 0.0
    %432 = vmatprep.mubr.f32.mxu0 0.0
    %433 = vmatmul.mubr.f32.gmra.mxu0 %v366
    %v434 = vpop.f32.mrf.mxu0
    %v435 = vadd.f32 0.0, %v434
    %v436 = vpop.f32.mrf.mxu0
    %v437 = vadd.f32 0.0, %v436
    %438 = vdwg.mxu0
    %v439 = vadd.f32 %v437, %v282
    %v440 = vxor.u32 %v439, 2147483648
    %v441 = vmul.f32 %v440, 1.442695
    %v442 = vpow.pop %v441
    %v443 = vadd.f32 %v442, 1.0
    %v444 = vrcp.pop %v443
    %v445 = vmul.f32 1.0, %v444
    %v446 = vtanh.pop %v439
    %v447 = vmul.f32 %v445, %v306
    %449 = vrot.lane.b32.xlu0 %v446, 64
    %v450 = vpop.permute.xlu0 %449
    %v452 = vmul.f32 %v445, %v450
    %454 = vrot.lane.b32.xlu0 %v452, 32
    %v455 = vpop.permute.xlu0 %454
    %v457 = vadd.f32 %v447, %v455
    %v458 = vtanh.pop %v457
    %460 = vrot.lane.b32.xlu0 %v458, 64
    %v461 = vpop.permute.xlu0 %460
    %v463 = vmul.f32 %v445, %v461
    %464 = vset.pattern.permute.xlu0 2
    %465 = vperm.xlu0 %464, %v45
    %v466 = vpop.permute.xlu0 %465
    %v468 = vmul.f32 %v466, %v81
    %v469 = vadd.f32 %v468, %v88
    %v470 = vadd.f32 %v469, %v435
    %v471 = vxor.u32 %v470, 2147483648
    %v472 = vmul.f32 %v471, 1.442695
    %v473 = vpow.pop %v472
    %v474 = vadd.f32 %v473, 1.0
    %v475 = vrcp.pop %v474
    %v476 = vmul.f32 1.0, %v475
    %v477 = vtanh.pop %v470
    %v478 = vmul.f32 %v476, %v337
    %480 = vrot.lane.b32.xlu0 %v477, 64
    %v481 = vpop.permute.xlu0 %480
    %v483 = vmul.f32 %v476, %v481
    %485 = vrot.lane.b32.xlu0 %v483, 32
    %v486 = vpop.permute.xlu0 %485
    %v488 = vadd.f32 %v478, %v486
    %v489 = vtanh.pop %v488
    %491 = vrot.lane.b32.xlu0 %v489, 64
    %v492 = vpop.permute.xlu0 %491
    %v494 = vmul.f32 %v476, %v492
    %v497 = vunpack.c.l.s4 1983009808
    %v498 = vunpack.c.0.s8 %v497
    %v499 = vlaneseq
    %v500 = vshrl.u32 %v499, 7
    %v501 = vsub.s32 %v498, %v500
    %v502 = vrot.slane %v463, %v501
    %503 = vrot.lane.b32.xlu0 %v502, 64
    %v504 = vpop.permute.xlu0 %503
    %vm506 = vcmask 517376
    %507 = vst.msk [vmem:[#allocation2] sm:$0x3] %vm506, %v504
    %509 = vrot.lane.b32.xlu0 %v494, 32
    %v510 = vpop.permute.xlu0 %509
    %512 = vrot.lane.b32.xlu0 %v463, 64
    %v513 = vpop.permute.xlu0 %512
    %v515 = vsel %vm91, %v510, %v513
    %v517 = vsel %vm203, %v515, 0
    %519 = vmatprep.subr.mxu0 0.0
    %520 = vmatpush1.msra.mxu0 0.0
    %521 = vmatprep.subr.mxu0 0.0
    %522 = vmatpush1.msra.mxu0 0.0
    %523 = vmatprep.subr.mxu0 0.0
    %524 = vmatpush1.msra.mxu0 0.0
    %525 = vmatprep.subr.mxu0 0.0
    %526 = vmatpush1.msra.mxu0 0.0
    %527 = vmatprep.subr.mxu0 0.0
    %528 = vmatpush1.msra.mxu0 0.0
    %529 = vmatprep.subr.mxu0 0.0
    %530 = vmatpush1.msra.mxu0 0.0
    %531 = vmatprep.subr.mxu0 0.0
    %532 = vmatpush1.msra.mxu0 0.0
    %533 = vmatprep.subr.mxu0 0.0
    %534 = vmatpush1.msra.mxu0 0.0
    %535 = vmatprep.subr.mxu0 %v64
    %536 = vmatpush1.msra.mxu0 %v63
    %537 = vmatprep.subr.mxu0 %v62
    %538 = vmatpush1.msra.mxu0 %v61
    %539 = vmatprep.subr.mxu0 %v60
    %540 = vmatpush1.msra.mxu0 %v59
    %541 = vmatprep.subr.mxu0 %v58
    %542 = vmatpush1.msra.mxu0 %v57
    %543 = vmatprep.subr.mxu0 %v56
    %544 = vmatpush1.msra.mxu0 %v55
    %545 = vmatprep.subr.mxu0 %v54
    %546 = vmatpush1.msra.mxu0 %v53
    %547 = vmatprep.subr.mxu0 %v52
    %548 = vmatpush1.msra.mxu0 %v51
    %549 = vmatprep.subr.mxu0 %v50
    %550 = vmatpush1.msra.mxu0 %v49
    %551 = vmatprep.subr.mxu0 0.0
    %552 = vmatpush2.msra.mxu0 0.0
    %553 = vmatprep.subr.mxu0 0.0
    %554 = vmatpush2.msra.mxu0 0.0
    %555 = vmatprep.subr.mxu0 0.0
    %556 = vmatpush2.msra.mxu0 0.0
    %557 = vmatprep.subr.mxu0 0.0
    %558 = vmatpush2.msra.mxu0 0.0
    %559 = vmatprep.subr.mxu0 0.0
    %560 = vmatpush2.msra.mxu0 0.0
    %561 = vmatprep.subr.mxu0 0.0
    %562 = vmatpush2.msra.mxu0 0.0
    %563 = vmatprep.subr.mxu0 0.0
    %564 = vmatpush2.msra.mxu0 0.0
    %565 = vmatprep.subr.mxu0 0.0
    %566 = vmatpush2.msra.mxu0 0.0
    %567 = vmatprep.subr.mxu0 0.0
    %568 = vmatpush2.msra.mxu0 0.0
    %569 = vmatprep.subr.mxu0 0.0
    %570 = vmatpush2.msra.mxu0 0.0
    %571 = vmatprep.subr.mxu0 0.0
    %572 = vmatpush2.msra.mxu0 0.0
    %573 = vmatprep.subr.mxu0 0.0
    %574 = vmatpush2.msra.mxu0 0.0
    %575 = vmatprep.subr.mxu0 0.0
    %576 = vmatpush2.msra.mxu0 0.0
    %577 = vmatprep.subr.mxu0 0.0
    %578 = vmatpush2.msra.mxu0 0.0
    %579 = vmatprep.subr.mxu0 0.0
    %580 = vmatpush2.msra.mxu0 0.0
    %581 = vmatprep.subr.mxu0 0.0
    %582 = vmatpush2.msra.mxu0 0.0
    %583 = vmatprep.mubr.f32.mxu0 0.0
    %584 = vmatmul.mubr.f32.gmra.mxu0 %v517
    %v585 = vpop.f32.mrf.mxu0
    %v586 = vadd.f32 0.0, %v585
    %v587 = vpop.f32.mrf.mxu0
    %v588 = vadd.f32 0.0, %v587
    %589 = vdwg.mxu0
    %v590 = vadd.f32 %v588, %v282
    %v591 = vxor.u32 %v590, 2147483648
    %v592 = vmul.f32 %v591, 1.442695
    %v593 = vpow.pop %v592
    %v594 = vadd.f32 %v593, 1.0
    %v595 = vrcp.pop %v594
    %v596 = vmul.f32 1.0, %v595
    %v597 = vtanh.pop %v590
    %v598 = vmul.f32 %v596, %v457
    %600 = vrot.lane.b32.xlu0 %v597, 64
    %v601 = vpop.permute.xlu0 %600
    %v603 = vmul.f32 %v596, %v601
    %605 = vrot.lane.b32.xlu0 %v603, 32
    %v606 = vpop.permute.xlu0 %605
    %v608 = vadd.f32 %v598, %v606
    %v609 = vtanh.pop %v608
    %611 = vrot.lane.b32.xlu0 %v609, 64
    %v612 = vpop.permute.xlu0 %611
    %v614 = vmul.f32 %v596, %v612
    %615 = vset.pattern.permute.xlu0 3
    %616 = vperm.xlu0 %615, %v45
    %v617 = vpop.permute.xlu0 %616
    %v619 = vmul.f32 %v617, %v81
    %v620 = vadd.f32 %v619, %v88
    %v621 = vadd.f32 %v620, %v586
    %v622 = vxor.u32 %v621, 2147483648
    %v623 = vmul.f32 %v622, 1.442695
    %v624 = vpow.pop %v623
    %v625 = vadd.f32 %v624, 1.0
    %v626 = vrcp.pop %v625
    %v627 = vmul.f32 1.0, %v626
    %v628 = vtanh.pop %v621
    %v629 = vmul.f32 %v627, %v488
    %631 = vrot.lane.b32.xlu0 %v628, 64
    %v632 = vpop.permute.xlu0 %631
    %v634 = vmul.f32 %v627, %v632
    %636 = vrot.lane.b32.xlu0 %v634, 32
    %v637 = vpop.permute.xlu0 %636
    %v639 = vadd.f32 %v629, %v637
    %v640 = vtanh.pop %v639
    %642 = vrot.lane.b32.xlu0 %v640, 64
    %v643 = vpop.permute.xlu0 %642
    %v645 = vmul.f32 %v627, %v643
    %v648 = vunpack.c.l.s4 1983009808
    %v649 = vunpack.c.0.s8 %v648
    %v650 = vlaneseq
    %v651 = vshrl.u32 %v650, 7
    %v652 = vsub.s32 %v649, %v651
    %v653 = vrot.slane %v614, %v652
    %654 = vrot.lane.b32.xlu0 %v653, 96
    %v655 = vpop.permute.xlu0 %654
    %vm657 = vcmask 779776
    %658 = vst.msk [vmem:[#allocation2] sm:$0x3] %vm657, %v655
    %660 = vrot.lane.b32.xlu0 %v645, 32
    %v661 = vpop.permute.xlu0 %660
    %663 = vrot.lane.b32.xlu0 %v614, 64
    %v664 = vpop.permute.xlu0 %663
    %v666 = vsel %vm91, %v661, %v664
    %v668 = vsel %vm203, %v666, 0
    %670 = vmatprep.subr.mxu0 0.0
    %671 = vmatpush1.msra.mxu0 0.0
    %672 = vmatprep.subr.mxu0 0.0
    %673 = vmatpush1.msra.mxu0 0.0
    %674 = vmatprep.subr.mxu0 0.0
    %675 = vmatpush1.msra.mxu0 0.0
    %676 = vmatprep.subr.mxu0 0.0
    %677 = vmatpush1.msra.mxu0 0.0
    %678 = vmatprep.subr.mxu0 0.0
    %679 = vmatpush1.msra.mxu0 0.0
    %680 = vmatprep.subr.mxu0 0.0
    %681 = vmatpush1.msra.mxu0 0.0
    %682 = vmatprep.subr.mxu0 0.0
    %683 = vmatpush1.msra.mxu0 0.0
    %684 = vmatprep.subr.mxu0 0.0
    %685 = vmatpush1.msra.mxu0 0.0
    %686 = vmatprep.subr.mxu0 %v64
    %687 = vmatpush1.msra.mxu0 %v63
    %688 = vmatprep.subr.mxu0 %v62
    %689 = vmatpush1.msra.mxu0 %v61
    %690 = vmatprep.subr.mxu0 %v60
    %691 = vmatpush1.msra.mxu0 %v59
    %692 = vmatprep.subr.mxu0 %v58
    %693 = vmatpush1.msra.mxu0 %v57
    %694 = vmatprep.subr.mxu0 %v56
    %695 = vmatpush1.msra.mxu0 %v55
    %696 = vmatprep.subr.mxu0 %v54
    %697 = vmatpush1.msra.mxu0 %v53
    %698 = vmatprep.subr.mxu0 %v52
    %699 = vmatpush1.msra.mxu0 %v51
    %700 = vmatprep.subr.mxu0 %v50
    %701 = vmatpush1.msra.mxu0 %v49
    %702 = vmatprep.subr.mxu0 0.0
    %703 = vmatpush2.msra.mxu0 0.0
    %704 = vmatprep.subr.mxu0 0.0
    %705 = vmatpush2.msra.mxu0 0.0
    %706 = vmatprep.subr.mxu0 0.0
    %707 = vmatpush2.msra.mxu0 0.0
    %708 = vmatprep.subr.mxu0 0.0
    %709 = vmatpush2.msra.mxu0 0.0
    %710 = vmatprep.subr.mxu0 0.0
    %711 = vmatpush2.msra.mxu0 0.0
    %712 = vmatprep.subr.mxu0 0.0
    %713 = vmatpush2.msra.mxu0 0.0
    %714 = vmatprep.subr.mxu0 0.0
    %715 = vmatpush2.msra.mxu0 0.0
    %716 = vmatprep.subr.mxu0 0.0
    %717 = vmatpush2.msra.mxu0 0.0
    %718 = vmatprep.subr.mxu0 0.0
    %719 = vmatpush2.msra.mxu0 0.0
    %720 = vmatprep.subr.mxu0 0.0
    %721 = vmatpush2.msra.mxu0 0.0
    %722 = vmatprep.subr.mxu0 0.0
    %723 = vmatpush2.msra.mxu0 0.0
    %724 = vmatprep.subr.mxu0 0.0
    %725 = vmatpush2.msra.mxu0 0.0
    %726 = vmatprep.subr.mxu0 0.0
    %727 = vmatpush2.msra.mxu0 0.0
    %728 = vmatprep.subr.mxu0 0.0
    %729 = vmatpush2.msra.mxu0 0.0
    %730 = vmatprep.subr.mxu0 0.0
    %731 = vmatpush2.msra.mxu0 0.0
    %732 = vmatprep.subr.mxu0 0.0
    %733 = vmatpush2.msra.mxu0 0.0
    %734 = vmatprep.mubr.f32.mxu0 0.0
    %735 = vmatmul.mubr.f32.gmra.mxu0 %v668
    %v736 = vpop.f32.mrf.mxu0
    %v737 = vadd.f32 0.0, %v736
    %v738 = vpop.f32.mrf.mxu0
    %v739 = vadd.f32 0.0, %v738
    %740 = vdwg.mxu0
    %v741 = vadd.f32 %v739, %v282
    %v742 = vxor.u32 %v741, 2147483648
    %v743 = vmul.f32 %v742, 1.442695
    %v744 = vpow.pop %v743
    %v745 = vadd.f32 %v744, 1.0
    %v746 = vrcp.pop %v745
    %v747 = vmul.f32 1.0, %v746
    %v748 = vtanh.pop %v741
    %v749 = vmul.f32 %v747, %v608
    %751 = vrot.lane.b32.xlu0 %v748, 64
    %v752 = vpop.permute.xlu0 %751
    %v754 = vmul.f32 %v747, %v752
    %756 = vrot.lane.b32.xlu0 %v754, 32
    %v757 = vpop.permute.xlu0 %756
    %v759 = vadd.f32 %v749, %v757
    %v760 = vtanh.pop %v759
    %762 = vrot.lane.b32.xlu0 %v760, 64
    %v763 = vpop.permute.xlu0 %762
    %v765 = vmul.f32 %v747, %v763
    %766 = vset.pattern.permute.xlu0 4
    %767 = vperm.xlu0 %766, %v45
    %v768 = vpop.permute.xlu0 %767
    %v770 = vmul.f32 %v768, %v81
    %v771 = vadd.f32 %v770, %v88
    %v772 = vadd.f32 %v771, %v737
    %v773 = vxor.u32 %v772, 2147483648
    %v774 = vmul.f32 %v773, 1.442695
    %v775 = vpow.pop %v774
    %v776 = vadd.f32 %v775, 1.0
    %v777 = vrcp.pop %v776
    %v778 = vmul.f32 1.0, %v777
    %v779 = vtanh.pop %v772
    %v780 = vmul.f32 %v778, %v639
    %782 = vrot.lane.b32.xlu0 %v779, 64
    %v783 = vpop.permute.xlu0 %782
    %v785 = vmul.f32 %v778, %v783
    %787 = vrot.lane.b32.xlu0 %v785, 32
    %v788 = vpop.permute.xlu0 %787
    %v790 = vadd.f32 %v780, %v788
    %v791 = vtanh.pop %v790
    %793 = vrot.lane.b32.xlu0 %v791, 64
    %v794 = vpop.permute.xlu0 %793
    %v796 = vmul.f32 %v778, %v794
    %vm797 = vcmask 1042176
    %798 = vst.msk [vmem:[#allocation2] sm:$0x3] %vm797, %v765
    %800 = vrot.lane.b32.xlu0 %v796, 32
    %v801 = vpop.permute.xlu0 %800
    %804 = vrot.lane.b32.xlu0 %v765, 64
    %v805 = vpop.permute.xlu0 %804
    %v807 = vsel %vm91, %v801, %v805
    %v809 = vsel %vm203, %v807, 0
    %811 = vmatprep.subr.mxu0 0.0
    %812 = vmatpush1.msra.mxu0 0.0
    %813 = vmatprep.subr.mxu0 0.0
    %814 = vmatpush1.msra.mxu0 0.0
    %815 = vmatprep.subr.mxu0 0.0
    %816 = vmatpush1.msra.mxu0 0.0
    %817 = vmatprep.subr.mxu0 0.0
    %818 = vmatpush1.msra.mxu0 0.0
    %819 = vmatprep.subr.mxu0 0.0
    %820 = vmatpush1.msra.mxu0 0.0
    %821 = vmatprep.subr.mxu0 0.0
    %822 = vmatpush1.msra.mxu0 0.0
    %823 = vmatprep.subr.mxu0 0.0
    %824 = vmatpush1.msra.mxu0 0.0
    %825 = vmatprep.subr.mxu0 0.0
    %826 = vmatpush1.msra.mxu0 0.0
    %827 = vmatprep.subr.mxu0 %v64
    %828 = vmatpush1.msra.mxu0 %v63
    %829 = vmatprep.subr.mxu0 %v62
    %830 = vmatpush1.msra.mxu0 %v61
    %831 = vmatprep.subr.mxu0 %v60
    %832 = vmatpush1.msra.mxu0 %v59
    %833 = vmatprep.subr.mxu0 %v58
    %834 = vmatpush1.msra.mxu0 %v57
    %835 = vmatprep.subr.mxu0 %v56
    %836 = vmatpush1.msra.mxu0 %v55
    %837 = vmatprep.subr.mxu0 %v54
    %838 = vmatpush1.msra.mxu0 %v53
    %839 = vmatprep.subr.mxu0 %v52
    %840 = vmatpush1.msra.mxu0 %v51
    %841 = vmatprep.subr.mxu0 %v50
    %842 = vmatpush1.msra.mxu0 %v49
    %843 = vmatprep.subr.mxu0 0.0
    %844 = vmatpush2.msra.mxu0 0.0
    %845 = vmatprep.subr.mxu0 0.0
    %846 = vmatpush2.msra.mxu0 0.0
    %847 = vmatprep.subr.mxu0 0.0
    %848 = vmatpush2.msra.mxu0 0.0
    %849 = vmatprep.subr.mxu0 0.0
    %850 = vmatpush2.msra.mxu0 0.0
    %851 = vmatprep.subr.mxu0 0.0
    %852 = vmatpush2.msra.mxu0 0.0
    %853 = vmatprep.subr.mxu0 0.0
    %854 = vmatpush2.msra.mxu0 0.0
    %855 = vmatprep.subr.mxu0 0.0
    %856 = vmatpush2.msra.mxu0 0.0
    %857 = vmatprep.subr.mxu0 0.0
    %858 = vmatpush2.msra.mxu0 0.0
    %859 = vmatprep.subr.mxu0 0.0
    %860 = vmatpush2.msra.mxu0 0.0
    %861 = vmatprep.subr.mxu0 0.0
    %862 = vmatpush2.msra.mxu0 0.0
    %863 = vmatprep.subr.mxu0 0.0
    %864 = vmatpush2.msra.mxu0 0.0
    %865 = vmatprep.subr.mxu0 0.0
    %866 = vmatpush2.msra.mxu0 0.0
    %867 = vmatprep.subr.mxu0 0.0
    %868 = vmatpush2.msra.mxu0 0.0
    %869 = vmatprep.subr.mxu0 0.0
    %870 = vmatpush2.msra.mxu0 0.0
    %871 = vmatprep.subr.mxu0 0.0
    %872 = vmatpush2.msra.mxu0 0.0
    %873 = vmatprep.subr.mxu0 0.0
    %874 = vmatpush2.msra.mxu0 0.0
    %875 = vmatprep.mubr.f32.mxu0 0.0
    %876 = vmatmul.mubr.f32.gmra.mxu0 %v809
    %v877 = vpop.f32.mrf.mxu0
    %v878 = vadd.f32 0.0, %v877
    %v879 = vpop.f32.mrf.mxu0
    %v880 = vadd.f32 0.0, %v879
    %881 = vdwg.mxu0
    %v882 = vadd.f32 %v880, %v282
    %v883 = vxor.u32 %v882, 2147483648
    %v884 = vmul.f32 %v883, 1.442695
    %v885 = vpow.pop %v884
    %v886 = vadd.f32 %v885, 1.0
    %v887 = vrcp.pop %v886
    %v888 = vmul.f32 1.0, %v887
    %v889 = vtanh.pop %v882
    %v890 = vmul.f32 %v888, %v759
    %892 = vrot.lane.b32.xlu0 %v889, 64
    %v893 = vpop.permute.xlu0 %892
    %v895 = vmul.f32 %v888, %v893
    %897 = vrot.lane.b32.xlu0 %v895, 32
    %v898 = vpop.permute.xlu0 %897
    %v900 = vadd.f32 %v890, %v898
    %v901 = vtanh.pop %v900
    %903 = vrot.lane.b32.xlu0 %v901, 64
    %v904 = vpop.permute.xlu0 %903
    %v906 = vmul.f32 %v888, %v904
    %907 = vset.pattern.permute.xlu0 5
    %908 = vperm.xlu0 %907, %v45
    %v909 = vpop.permute.xlu0 %908
    %v911 = vmul.f32 %v909, %v81
    %v912 = vadd.f32 %v911, %v88
    %v913 = vadd.f32 %v912, %v878
    %v914 = vxor.u32 %v913, 2147483648
    %v915 = vmul.f32 %v914, 1.442695
    %v916 = vpow.pop %v915
    %v917 = vadd.f32 %v916, 1.0
    %v918 = vrcp.pop %v917
    %v919 = vmul.f32 1.0, %v918
    %v920 = vtanh.pop %v913
    %v921 = vmul.f32 %v919, %v790
    %923 = vrot.lane.b32.xlu0 %v920, 64
    %v924 = vpop.permute.xlu0 %923
    %v926 = vmul.f32 %v919, %v924
    %928 = vrot.lane.b32.xlu0 %v926, 32
    %v929 = vpop.permute.xlu0 %928
    %v931 = vadd.f32 %v921, %v929
    %v932 = vtanh.pop %v931
    %934 = vrot.lane.b32.xlu0 %v932, 64
    %v935 = vpop.permute.xlu0 %934
    %v937 = vmul.f32 %v919, %v935
    %v940 = vunpack.c.l.s4 1983009808
    %v941 = vunpack.c.0.s8 %v940
    %v942 = vlaneseq
    %v943 = vshrl.u32 %v942, 7
    %v944 = vsub.s32 %v941, %v943
    %v945 = vrot.slane %v906, %v944
    %946 = vrot.lane.b32.xlu0 %v945, 32
    %v947 = vpop.permute.xlu0 %946
    %949 = vst.msk [vmem:[#allocation2 + $0x2] sm:$0x3] %vm355, %v947
    %951 = vrot.lane.b32.xlu0 %v937, 32
    %v952 = vpop.permute.xlu0 %951
    %954 = vrot.lane.b32.xlu0 %v906, 64
    %v955 = vpop.permute.xlu0 %954
    %v957 = vsel %vm91, %v952, %v955
    %v959 = vsel %vm203, %v957, 0
    %961 = vmatprep.subr.mxu0 0.0
    %962 = vmatpush1.msra.mxu0 0.0
    %963 = vmatprep.subr.mxu0 0.0
    %964 = vmatpush1.msra.mxu0 0.0
    %965 = vmatprep.subr.mxu0 0.0
    %966 = vmatpush1.msra.mxu0 0.0
    %967 = vmatprep.subr.mxu0 0.0
    %968 = vmatpush1.msra.mxu0 0.0
    %969 = vmatprep.subr.mxu0 0.0
    %970 = vmatpush1.msra.mxu0 0.0
    %971 = vmatprep.subr.mxu0 0.0
    %972 = vmatpush1.msra.mxu0 0.0
    %973 = vmatprep.subr.mxu0 0.0
    %974 = vmatpush1.msra.mxu0 0.0
    %975 = vmatprep.subr.mxu0 0.0
    %976 = vmatpush1.msra.mxu0 0.0
    %977 = vmatprep.subr.mxu0 %v64
    %978 = vmatpush1.msra.mxu0 %v63
    %979 = vmatprep.subr.mxu0 %v62
    %980 = vmatpush1.msra.mxu0 %v61
    %981 = vmatprep.subr.mxu0 %v60
    %982 = vmatpush1.msra.mxu0 %v59
    %983 = vmatprep.subr.mxu0 %v58
    %984 = vmatpush1.msra.mxu0 %v57
    %985 = vmatprep.subr.mxu0 %v56
    %986 = vmatpush1.msra.mxu0 %v55
    %987 = vmatprep.subr.mxu0 %v54
    %988 = vmatpush1.msra.mxu0 %v53
    %989 = vmatprep.subr.mxu0 %v52
    %990 = vmatpush1.msra.mxu0 %v51
    %991 = vmatprep.subr.mxu0 %v50
    %992 = vmatpush1.msra.mxu0 %v49
    %993 = vmatprep.subr.mxu0 0.0
    %994 = vmatpush2.msra.mxu0 0.0
    %995 = vmatprep.subr.mxu0 0.0
    %996 = vmatpush2.msra.mxu0 0.0
    %997 = vmatprep.subr.mxu0 0.0
    %998 = vmatpush2.msra.mxu0 0.0
    %999 = vmatprep.subr.mxu0 0.0
    %1000 = vmatpush2.msra.mxu0 0.0
    %1001 = vmatprep.subr.mxu0 0.0
    %1002 = vmatpush2.msra.mxu0 0.0
    %1003 = vmatprep.subr.mxu0 0.0
    %1004 = vmatpush2.msra.mxu0 0.0
    %1005 = vmatprep.subr.mxu0 0.0
    %1006 = vmatpush2.msra.mxu0 0.0
    %1007 = vmatprep.subr.mxu0 0.0
    %1008 = vmatpush2.msra.mxu0 0.0
    %1009 = vmatprep.subr.mxu0 0.0
    %1010 = vmatpush2.msra.mxu0 0.0
    %1011 = vmatprep.subr.mxu0 0.0
    %1012 = vmatpush2.msra.mxu0 0.0
    %1013 = vmatprep.subr.mxu0 0.0
    %1014 = vmatpush2.msra.mxu0 0.0
    %1015 = vmatprep.subr.mxu0 0.0
    %1016 = vmatpush2.msra.mxu0 0.0
    %1017 = vmatprep.subr.mxu0 0.0
    %1018 = vmatpush2.msra.mxu0 0.0
    %1019 = vmatprep.subr.mxu0 0.0
    %1020 = vmatpush2.msra.mxu0 0.0
    %1021 = vmatprep.subr.mxu0 0.0
    %1022 = vmatpush2.msra.mxu0 0.0
    %1023 = vmatprep.subr.mxu0 0.0
    %1024 = vmatpush2.msra.mxu0 0.0
    %1025 = vmatprep.mubr.f32.mxu0 0.0
    %1026 = vmatmul.mubr.f32.gmra.mxu0 %v959
    %v1027 = vpop.f32.mrf.mxu0
    %v1028 = vadd.f32 0.0, %v1027
    %v1029 = vpop.f32.mrf.mxu0
    %v1030 = vadd.f32 0.0, %v1029
    %1031 = vdwg.mxu0
    %v1032 = vadd.f32 %v1030, %v282
    %v1033 = vxor.u32 %v1032, 2147483648
    %v1034 = vmul.f32 %v1033, 1.442695
    %v1035 = vpow.pop %v1034
    %v1036 = vadd.f32 %v1035, 1.0
    %v1037 = vrcp.pop %v1036
    %v1038 = vmul.f32 1.0, %v1037
    %v1039 = vtanh.pop %v1032
    %v1040 = vmul.f32 %v1038, %v900
    %1042 = vrot.lane.b32.xlu0 %v1039, 64
    %v1043 = vpop.permute.xlu0 %1042
    %v1045 = vmul.f32 %v1038, %v1043
    %1047 = vrot.lane.b32.xlu0 %v1045, 32
    %v1048 = vpop.permute.xlu0 %1047
    %v1050 = vadd.f32 %v1040, %v1048
    %v1051 = vtanh.pop %v1050
    %1053 = vrot.lane.b32.xlu0 %v1051, 64
    %v1054 = vpop.permute.xlu0 %1053
    %v1056 = vmul.f32 %v1038, %v1054
    %1057 = vset.pattern.permute.xlu0 6
    %1058 = vperm.xlu0 %1057, %v45
    %v1059 = vpop.permute.xlu0 %1058
    %v1061 = vmul.f32 %v1059, %v81
    %v1062 = vadd.f32 %v1061, %v88
    %v1063 = vadd.f32 %v1062, %v1028
    %v1064 = vxor.u32 %v1063, 2147483648
    %v1065 = vmul.f32 %v1064, 1.442695
    %v1066 = vpow.pop %v1065
    %v1067 = vadd.f32 %v1066, 1.0
    %v1068 = vrcp.pop %v1067
    %v1069 = vmul.f32 1.0, %v1068
    %v1070 = vtanh.pop %v1063
    %v1071 = vmul.f32 %v1069, %v931
    %1073 = vrot.lane.b32.xlu0 %v1070, 64
    %v1074 = vpop.permute.xlu0 %1073
    %v1076 = vmul.f32 %v1069, %v1074
    %1078 = vrot.lane.b32.xlu0 %v1076, 32
    %v1079 = vpop.permute.xlu0 %1078
    %v1081 = vadd.f32 %v1071, %v1079
    %v1082 = vtanh.pop %v1081
    %1084 = vrot.lane.b32.xlu0 %v1082, 64
    %v1085 = vpop.permute.xlu0 %1084
    %v1087 = vmul.f32 %v1069, %v1085
    %v1090 = vunpack.c.l.s4 1983009808
    %v1091 = vunpack.c.0.s8 %v1090
    %v1092 = vlaneseq
    %v1093 = vshrl.u32 %v1092, 7
    %v1094 = vsub.s32 %v1091, %v1093
    %v1095 = vrot.slane %v1056, %v1094
    %1096 = vrot.lane.b32.xlu0 %v1095, 64
    %v1097 = vpop.permute.xlu0 %1096
    %1099 = vst.msk [vmem:[#allocation2 + $0x2] sm:$0x3] %vm506, %v1097
    %1101 = vrot.lane.b32.xlu0 %v1087, 32
    %v1102 = vpop.permute.xlu0 %1101
    %1104 = vrot.lane.b32.xlu0 %v1056, 64
    %v1105 = vpop.permute.xlu0 %1104
    %v1107 = vsel %vm91, %v1102, %v1105
    %v1109 = vsel %vm203, %v1107, 0
    %1111 = vmatprep.subr.mxu0 0.0
    %1112 = vmatpush1.msra.mxu0 0.0
    %1113 = vmatprep.subr.mxu0 0.0
    %1114 = vmatpush1.msra.mxu0 0.0
    %1115 = vmatprep.subr.mxu0 0.0
    %1116 = vmatpush1.msra.mxu0 0.0
    %1117 = vmatprep.subr.mxu0 0.0
    %1118 = vmatpush1.msra.mxu0 0.0
    %1119 = vmatprep.subr.mxu0 0.0
    %1120 = vmatpush1.msra.mxu0 0.0
    %1121 = vmatprep.subr.mxu0 0.0
    %1122 = vmatpush1.msra.mxu0 0.0
    %1123 = vmatprep.subr.mxu0 0.0
    %1124 = vmatpush1.msra.mxu0 0.0
    %1125 = vmatprep.subr.mxu0 0.0
    %1126 = vmatpush1.msra.mxu0 0.0
    %1127 = vmatprep.subr.mxu0 %v64
    %1128 = vmatpush1.msra.mxu0 %v63
    %1129 = vmatprep.subr.mxu0 %v62
    %1130 = vmatpush1.msra.mxu0 %v61
    %1131 = vmatprep.subr.mxu0 %v60
    %1132 = vmatpush1.msra.mxu0 %v59
    %1133 = vmatprep.subr.mxu0 %v58
    %1134 = vmatpush1.msra.mxu0 %v57
    %1135 = vmatprep.subr.mxu0 %v56
    %1136 = vmatpush1.msra.mxu0 %v55
    %1137 = vmatprep.subr.mxu0 %v54
    %1138 = vmatpush1.msra.mxu0 %v53
    %1139 = vmatprep.subr.mxu0 %v52
    %1140 = vmatpush1.msra.mxu0 %v51
    %1141 = vmatprep.subr.mxu0 %v50
    %1142 = vmatpush1.msra.mxu0 %v49
    %1143 = vmatprep.subr.mxu0 0.0
    %1144 = vmatpush2.msra.mxu0 0.0
    %1145 = vmatprep.subr.mxu0 0.0
    %1146 = vmatpush2.msra.mxu0 0.0
    %1147 = vmatprep.subr.mxu0 0.0
    %1148 = vmatpush2.msra.mxu0 0.0
    %1149 = vmatprep.subr.mxu0 0.0
    %1150 = vmatpush2.msra.mxu0 0.0
    %1151 = vmatprep.subr.mxu0 0.0
    %1152 = vmatpush2.msra.mxu0 0.0
    %1153 = vmatprep.subr.mxu0 0.0
    %1154 = vmatpush2.msra.mxu0 0.0
    %1155 = vmatprep.subr.mxu0 0.0
    %1156 = vmatpush2.msra.mxu0 0.0
    %1157 = vmatprep.subr.mxu0 0.0
    %1158 = vmatpush2.msra.mxu0 0.0
    %1159 = vmatprep.subr.mxu0 0.0
    %1160 = vmatpush2.msra.mxu0 0.0
    %1161 = vmatprep.subr.mxu0 0.0
    %1162 = vmatpush2.msra.mxu0 0.0
    %1163 = vmatprep.subr.mxu0 0.0
    %1164 = vmatpush2.msra.mxu0 0.0
    %1165 = vmatprep.subr.mxu0 0.0
    %1166 = vmatpush2.msra.mxu0 0.0
    %1167 = vmatprep.subr.mxu0 0.0
    %1168 = vmatpush2.msra.mxu0 0.0
    %1169 = vmatprep.subr.mxu0 0.0
    %1170 = vmatpush2.msra.mxu0 0.0
    %1171 = vmatprep.subr.mxu0 0.0
    %1172 = vmatpush2.msra.mxu0 0.0
    %1173 = vmatprep.subr.mxu0 0.0
    %1174 = vmatpush2.msra.mxu0 0.0
    %1175 = vmatprep.mubr.f32.mxu0 0.0
    %1176 = vmatmul.mubr.f32.gmra.mxu0 %v1109
    %v1177 = vpop.f32.mrf.mxu0
    %v1178 = vadd.f32 0.0, %v1177
    %v1179 = vpop.f32.mrf.mxu0
    %v1180 = vadd.f32 0.0, %v1179
    %1181 = vdwg.mxu0
    %v1182 = vadd.f32 %v1180, %v282
    %v1183 = vxor.u32 %v1182, 2147483648
    %v1184 = vmul.f32 %v1183, 1.442695
    %v1185 = vpow.pop %v1184
    %v1186 = vadd.f32 %v1185, 1.0
    %v1187 = vrcp.pop %v1186
    %v1188 = vmul.f32 1.0, %v1187
    %v1189 = vtanh.pop %v1182
    %v1190 = vmul.f32 %v1188, %v1050
    %1192 = vrot.lane.b32.xlu0 %v1189, 64
    %v1193 = vpop.permute.xlu0 %1192
    %v1195 = vmul.f32 %v1188, %v1193
    %1197 = vrot.lane.b32.xlu0 %v1195, 32
    %v1198 = vpop.permute.xlu0 %1197
    %v1200 = vadd.f32 %v1190, %v1198
    %v1201 = vtanh.pop %v1200
    %1203 = vrot.lane.b32.xlu0 %v1201, 64
    %v1204 = vpop.permute.xlu0 %1203
    %v1206 = vmul.f32 %v1188, %v1204
    %1207 = vset.pattern.permute.xlu0 7
    %1208 = vperm.xlu0 %1207, %v45
    %v1209 = vpop.permute.xlu0 %1208
    %v1211 = vmul.f32 %v1209, %v81
    %v1212 = vadd.f32 %v1211, %v88
    %v1213 = vadd.f32 %v1212, %v1178
    %v1214 = vxor.u32 %v1213, 2147483648
    %v1215 = vmul.f32 %v1214, 1.442695
    %v1216 = vpow.pop %v1215
    %v1217 = vadd.f32 %v1216, 1.0
    %v1218 = vrcp.pop %v1217
    %v1219 = vmul.f32 1.0, %v1218
    %v1220 = vtanh.pop %v1213
    %v1221 = vmul.f32 %v1219, %v1081
    %1223 = vrot.lane.b32.xlu0 %v1220, 64
    %v1224 = vpop.permute.xlu0 %1223
    %v1226 = vmul.f32 %v1219, %v1224
    %1228 = vrot.lane.b32.xlu0 %v1226, 32
    %v1229 = vpop.permute.xlu0 %1228
    %v1231 = vadd.f32 %v1221, %v1229
    %v1232 = vtanh.pop %v1231
    %1234 = vrot.lane.b32.xlu0 %v1232, 64
    %v1235 = vpop.permute.xlu0 %1234
    %v1237 = vmul.f32 %v1219, %v1235
    %v1240 = vunpack.c.l.s4 1983009808
    %v1241 = vunpack.c.0.s8 %v1240
    %v1242 = vlaneseq
    %v1243 = vshrl.u32 %v1242, 7
    %v1244 = vsub.s32 %v1241, %v1243
    %v1245 = vrot.slane %v1206, %v1244
    %1246 = vrot.lane.b32.xlu0 %v1245, 96
    %v1247 = vpop.permute.xlu0 %1246
    %1249 = vst.msk [vmem:[#allocation2 + $0x2] sm:$0x3] %vm657, %v1247
    %1251 = vrot.lane.b32.xlu0 %v1237, 32
    %v1252 = vpop.permute.xlu0 %1251
    %1254 = vrot.lane.b32.xlu0 %v1206, 64
    %v1255 = vpop.permute.xlu0 %1254
    %v1257 = vsel %vm91, %v1252, %v1255
    %v1259 = vsel %vm203, %v1257, 0
    %1261 = vmatprep.subr.mxu0 0.0
    %1262 = vmatpush1.msra.mxu0 0.0
    %1263 = vmatprep.subr.mxu0 0.0
    %1264 = vmatpush1.msra.mxu0 0.0
    %1265 = vmatprep.subr.mxu0 0.0
    %1266 = vmatpush1.msra.mxu0 0.0
    %1267 = vmatprep.subr.mxu0 0.0
    %1268 = vmatpush1.msra.mxu0 0.0
    %1269 = vmatprep.subr.mxu0 0.0
    %1270 = vmatpush1.msra.mxu0 0.0
    %1271 = vmatprep.subr.mxu0 0.0
    %1272 = vmatpush1.msra.mxu0 0.0
    %1273 = vmatprep.subr.mxu0 0.0
    %1274 = vmatpush1.msra.mxu0 0.0
    %1275 = vmatprep.subr.mxu0 0.0
    %1276 = vmatpush1.msra.mxu0 0.0
    %1277 = vmatprep.subr.mxu0 0.0
    %1278 = vmatpush1.msra.mxu0 %v64
    %1279 = vmatprep.subr.mxu0 0.0
    %1280 = vmatpush1.msra.mxu0 %v62
    %1281 = vmatprep.subr.mxu0 0.0
    %1282 = vmatpush1.msra.mxu0 %v60
    %1283 = vmatprep.subr.mxu0 0.0
    %1284 = vmatpush1.msra.mxu0 %v58
    %1285 = vmatprep.subr.mxu0 0.0
    %1286 = vmatpush1.msra.mxu0 %v56
    %1287 = vmatprep.subr.mxu0 0.0
    %1288 = vmatpush1.msra.mxu0 %v54
    %1289 = vmatprep.subr.mxu0 0.0
    %1290 = vmatpush1.msra.mxu0 %v52
    %1291 = vmatprep.subr.mxu0 0.0
    %1292 = vmatpush1.msra.mxu0 %v50
    %1293 = vmatprep.subr.mxu0 0.0
    %1294 = vmatpush2.msra.mxu0 0.0
    %1295 = vmatprep.subr.mxu0 0.0
    %1296 = vmatpush2.msra.mxu0 0.0
    %1297 = vmatprep.subr.mxu0 0.0
    %1298 = vmatpush2.msra.mxu0 0.0
    %1299 = vmatprep.subr.mxu0 0.0
    %1300 = vmatpush2.msra.mxu0 0.0
    %1301 = vmatprep.subr.mxu0 0.0
    %1302 = vmatpush2.msra.mxu0 0.0
    %1303 = vmatprep.subr.mxu0 0.0
    %1304 = vmatpush2.msra.mxu0 0.0
    %1305 = vmatprep.subr.mxu0 0.0
    %1306 = vmatpush2.msra.mxu0 0.0
    %1307 = vmatprep.subr.mxu0 0.0
    %1308 = vmatpush2.msra.mxu0 0.0
    %1309 = vmatprep.subr.mxu0 0.0
    %1310 = vmatpush2.msra.mxu0 0.0
    %1311 = vmatprep.subr.mxu0 0.0
    %1312 = vmatpush2.msra.mxu0 0.0
    %1313 = vmatprep.subr.mxu0 0.0
    %1314 = vmatpush2.msra.mxu0 0.0
    %1315 = vmatprep.subr.mxu0 0.0
    %1316 = vmatpush2.msra.mxu0 0.0
    %1317 = vmatprep.subr.mxu0 0.0
    %1318 = vmatpush2.msra.mxu0 0.0
    %1319 = vmatprep.subr.mxu0 0.0
    %1320 = vmatpush2.msra.mxu0 0.0
    %1321 = vmatprep.subr.mxu0 0.0
    %1322 = vmatpush2.msra.mxu0 0.0
    %1323 = vmatprep.subr.mxu0 0.0
    %1324 = vmatpush2.msra.mxu0 0.0
    %1325 = vmatprep.mubr.f32.mxu0 0.0
    %1326 = vmatmul.mubr.f32.gmra.mxu0 %v1259
    %v1327 = vpop.f32.mrf.mxu0
    %v1328 = vadd.f32 %v282, %v1327
    %v1329 = vpop.f32.mrf.mxu0
    %1330 = vdwg.mxu0
    %v1331 = vxor.u32 %v1328, 2147483648
    %v1332 = vmul.f32 %v1331, 1.442695
    %v1333 = vpow.pop %v1332
    %v1334 = vadd.f32 %v1333, 1.0
    %v1335 = vrcp.pop %v1334
    %v1336 = vmul.f32 1.0, %v1335
    %v1337 = vtanh.pop %v1328
    %v1338 = vmul.f32 %v1336, %v1200
    %1340 = vrot.lane.b32.xlu0 %v1337, 64
    %v1341 = vpop.permute.xlu0 %1340
    %v1343 = vmul.f32 %v1336, %v1341
    %1345 = vrot.lane.b32.xlu0 %v1343, 32
    %v1346 = vpop.permute.xlu0 %1345
    %v1348 = vadd.f32 %v1338, %v1346
    %v1349 = vtanh.pop %v1348
    %1351 = vrot.lane.b32.xlu0 %v1349, 64
    %v1352 = vpop.permute.xlu0 %1351
    %v1354 = vmul.f32 %v1336, %v1352
    %1355 = vst.msk [vmem:[#allocation2 + $0x2] sm:$0x3] %vm797, %v1354
    %v1356 = vmul.f32 %v45, 0.6847
    %v1357 = vadd.f32 %v1356, 0.32201442
    %v1358 = vmul.f32 %v45, 0.7132
    %v1359 = vadd.f32 %v1358, 0.23806617
    %vm1360 = vcmp.le.f32.partialorder %v1357, %v71
    %v1361 = vsel %vm1360, 1.0, 0.0
    %vm1362 = vcmp.le.f32.partialorder %v71, %v1359
    %v1363 = vsel %vm1362, 1.0, 0.0
    %v1364 = vmul.f32 %v1357, %v1361
    %v1365 = vmul.f32 %v1359, %v1363
    %v1366 = vadd.f32 %v1364, %v1365
    %v1367 = vsub.f32 1.0, %v1361
    %v1368 = vmul.f32 %v71, %v1367
    %v1369 = vsub.f32 1.0, %v1363
    %v1370 = vmul.f32 %v1368, %v1369
    %v1371 = vadd.f32 %v1366, %v1370
    %vm1372 = vcmask 1024
    %1373 = vst.msk [vmem:[#allocation9] sm:$0x3] %vm1372, %v1371
    %1375 = vrot.lane.b32.xlu0 %v1371, 1
    %v1376 = vpop.permute.xlu0 %1375
    %vm1378 = vcmp.le.f32.partialorder %v1357, %v1376
    %v1379 = vsel %vm1378, 1.0, 0.0
    %1381 = vrot.lane.b32.xlu0 %v1359, 127
    %v1382 = vpop.permute.xlu0 %1381
    %vm1384 = vcmp.le.f32.partialorder %v1371, %v1382
    %v1385 = vsel %vm1384, 1.0, 0.0
    %v1386 = vmul.f32 %v1357, %v1379
    %1388 = vrot.lane.b32.xlu0 %v1385, 1
    %v1389 = vpop.permute.xlu0 %1388
    %v1391 = vmul.f32 %v1359, %v1389
    %v1392 = vadd.f32 %v1386, %v1391
    %v1393 = vsub.f32 1.0, %v1379
    %1395 = vrot.lane.b32.xlu0 %v1393, 127
    %v1396 = vpop.permute.xlu0 %1395
    %v1398 = vmul.f32 %v1371, %v1396
    %v1399 = vsub.f32 1.0, %v1385
    %v1400 = vmul.f32 %v1398, %v1399
    %1402 = vrot.lane.b32.xlu0 %v1400, 1
    %v1403 = vpop.permute.xlu0 %1402
    %v1405 = vadd.f32 %v1392, %v1403
    %vm1406 = vcmask 9224
    %1407 = vst.msk [vmem:[#allocation9] sm:$0x3] %vm1406, %v1405
    %1409 = vrot.lane.b32.xlu0 %v1405, 1
    %v1410 = vpop.permute.xlu0 %1409
    %vm1412 = vcmp.le.f32.partialorder %v1357, %v1410
    %v1413 = vsel %vm1412, 1.0, 0.0
    %vm1414 = vcmp.le.f32.partialorder %v1405, %v1382
    %v1415 = vsel %vm1414, 1.0, 0.0
    %v1416 = vmul.f32 %v1357, %v1413
    %1418 = vrot.lane.b32.xlu0 %v1415, 1
    %v1419 = vpop.permute.xlu0 %1418
    %v1421 = vmul.f32 %v1359, %v1419
    %v1422 = vadd.f32 %v1416, %v1421
    %v1423 = vsub.f32 1.0, %v1413
    %1425 = vrot.lane.b32.xlu0 %v1423, 127
    %v1426 = vpop.permute.xlu0 %1425
    %v1428 = vmul.f32 %v1405, %v1426
    %v1429 = vsub.f32 1.0, %v1415
    %v1430 = vmul.f32 %v1428, %v1429
    %1432 = vrot.lane.b32.xlu0 %v1430, 1
    %v1433 = vpop.permute.xlu0 %1432
    %v1435 = vadd.f32 %v1422, %v1433
    %vm1436 = vcmask 17424
    %1437 = vst.msk [vmem:[#allocation9] sm:$0x3] %vm1436, %v1435
    %1439 = vrot.lane.b32.xlu0 %v1435, 1
    %v1440 = vpop.permute.xlu0 %1439
    %vm1442 = vcmp.le.f32.partialorder %v1357, %v1440
    %v1443 = vsel %vm1442, 1.0, 0.0
    %vm1444 = vcmp.le.f32.partialorder %v1435, %v1382
    %v1445 = vsel %vm1444, 1.0, 0.0
    %v1446 = vmul.f32 %v1357, %v1443
    %1448 = vrot.lane.b32.xlu0 %v1445, 1
    %v1449 = vpop.permute.xlu0 %1448
    %v1451 = vmul.f32 %v1359, %v1449
    %v1452 = vadd.f32 %v1446, %v1451
    %v1453 = vsub.f32 1.0, %v1443
    %1455 = vrot.lane.b32.xlu0 %v1453, 127
    %v1456 = vpop.permute.xlu0 %1455
    %v1458 = vmul.f32 %v1435, %v1456
    %v1459 = vsub.f32 1.0, %v1445
    %v1460 = vmul.f32 %v1458, %v1459
    %1462 = vrot.lane.b32.xlu0 %v1460, 1
    %v1463 = vpop.permute.xlu0 %1462
    %v1465 = vadd.f32 %v1452, %v1463
    %vm1466 = vcmask 25624
    %1467 = vst.msk [vmem:[#allocation9] sm:$0x3] %vm1466, %v1465
    %1469 = vrot.lane.b32.xlu0 %v1465, 1
    %v1470 = vpop.permute.xlu0 %1469
    %vm1472 = vcmp.le.f32.partialorder %v1357, %v1470
    %v1473 = vsel %vm1472, 1.0, 0.0
    %vm1474 = vcmp.le.f32.partialorder %v1465, %v1382
    %v1475 = vsel %vm1474, 1.0, 0.0
    %v1476 = vmul.f32 %v1357, %v1473
    %1478 = vrot.lane.b32.xlu0 %v1475, 1
    %v1479 = vpop.permute.xlu0 %1478
    %v1481 = vmul.f32 %v1359, %v1479
    %v1482 = vadd.f32 %v1476, %v1481
    %v1483 = vsub.f32 1.0, %v1473
    %1485 = vrot.lane.b32.xlu0 %v1483, 127
    %v1486 = vpop.permute.xlu0 %1485
    %v1488 = vmul.f32 %v1465, %v1486
    %v1489 = vsub.f32 1.0, %v1475
    %v1490 = vmul.f32 %v1488, %v1489
    %1492 = vrot.lane.b32.xlu0 %v1490, 1
    %v1493 = vpop.permute.xlu0 %1492
    %v1495 = vadd.f32 %v1482, %v1493
    %vm1496 = vcmask 33824
    %1497 = vst.msk [vmem:[#allocation9] sm:$0x3] %vm1496, %v1495
    %1499 = vrot.lane.b32.xlu0 %v1495, 1
    %v1500 = vpop.permute.xlu0 %1499
    %vm1502 = vcmp.le.f32.partialorder %v1357, %v1500
    %v1503 = vsel %vm1502, 1.0, 0.0
    %vm1504 = vcmp.le.f32.partialorder %v1495, %v1382
    %v1505 = vsel %vm1504, 1.0, 0.0
    %v1506 = vmul.f32 %v1357, %v1503
    %1508 = vrot.lane.b32.xlu0 %v1505, 1
    %v1509 = vpop.permute.xlu0 %1508
    %v1511 = vmul.f32 %v1359, %v1509
    %v1512 = vadd.f32 %v1506, %v1511
    %v1513 = vsub.f32 1.0, %v1503
    %1515 = vrot.lane.b32.xlu0 %v1513, 127
    %v1516 = vpop.permute.xlu0 %1515
    %v1518 = vmul.f32 %v1495, %v1516
    %v1519 = vsub.f32 1.0, %v1505
    %v1520 = vmul.f32 %v1518, %v1519
    %1522 = vrot.lane.b32.xlu0 %v1520, 1
    %v1523 = vpop.permute.xlu0 %1522
    %v1525 = vadd.f32 %v1512, %v1523
    %vm1526 = vcmask 42024
    %1527 = vst.msk [vmem:[#allocation9] sm:$0x3] %vm1526, %v1525
    %1529 = vrot.lane.b32.xlu0 %v1525, 1
    %v1530 = vpop.permute.xlu0 %1529
    %vm1532 = vcmp.le.f32.partialorder %v1357, %v1530
    %v1533 = vsel %vm1532, 1.0, 0.0
    %vm1534 = vcmp.le.f32.partialorder %v1525, %v1382
    %v1535 = vsel %vm1534, 1.0, 0.0
    %v1536 = vmul.f32 %v1357, %v1533
    %1538 = vrot.lane.b32.xlu0 %v1535, 1
    %v1539 = vpop.permute.xlu0 %1538
    %v1541 = vmul.f32 %v1359, %v1539
    %v1542 = vadd.f32 %v1536, %v1541
    %v1543 = vsub.f32 1.0, %v1533
    %1545 = vrot.lane.b32.xlu0 %v1543, 127
    %v1546 = vpop.permute.xlu0 %1545
    %v1548 = vmul.f32 %v1525, %v1546
    %v1549 = vsub.f32 1.0, %v1535
    %v1550 = vmul.f32 %v1548, %v1549
    %1552 = vrot.lane.b32.xlu0 %v1550, 1
    %v1553 = vpop.permute.xlu0 %1552
    %v1555 = vadd.f32 %v1542, %v1553
    %vm1556 = vcmask 50224
    %1557 = vst.msk [vmem:[#allocation9] sm:$0x3] %vm1556, %v1555
    %1559 = vrot.lane.b32.xlu0 %v1555, 1
    %v1560 = vpop.permute.xlu0 %1559
    %vm1562 = vcmp.le.f32.partialorder %v1357, %v1560
    %v1563 = vsel %vm1562, 1.0, 0.0
    %vm1564 = vcmp.le.f32.partialorder %v1555, %v1382
    %v1565 = vsel %vm1564, 1.0, 0.0
    %v1566 = vmul.f32 %v1357, %v1563
    %1568 = vrot.lane.b32.xlu0 %v1565, 1
    %v1569 = vpop.permute.xlu0 %1568
    %v1571 = vmul.f32 %v1359, %v1569
    %v1572 = vadd.f32 %v1566, %v1571
    %v1573 = vsub.f32 1.0, %v1563
    %1575 = vrot.lane.b32.xlu0 %v1573, 127
    %v1576 = vpop.permute.xlu0 %1575
    %v1578 = vmul.f32 %v1555, %v1576
    %v1579 = vsub.f32 1.0, %v1565
    %v1580 = vmul.f32 %v1578, %v1579
    %1582 = vrot.lane.b32.xlu0 %v1580, 1
    %v1583 = vpop.permute.xlu0 %1582
    %v1585 = vadd.f32 %v1572, %v1583
    %vm1586 = vcmask 58424
    %1587 = vst.msk [vmem:[#allocation9] sm:$0x3] %vm1586, %v1585
    %v1588 = vld [vmem:[#allocation2] sm:$0xf]
    %v1589 = vld [vmem:[%s8] sm:$0xff]
    %v1590 = vld [vmem:[%s8 + $0x8] sm:$0xff]
    %v1591 = vld [vmem:[%s8 + $0x10] sm:$0xff]
    %v1592 = vld [vmem:[%s8 + $0x18] sm:$0xff]
    %v1593 = vld [vmem:[%s8 + $0x20] sm:$0xff]
    %v1594 = vld [vmem:[%s8 + $0x28] sm:$0xff]
    %v1595 = vld [vmem:[%s8 + $0x30] sm:$0xff]
    %v1596 = vld [vmem:[%s8 + $0x38] sm:$0xff]
    %v1597 = vld [vmem:[%s8 + $0x40] sm:$0xff]
    %v1598 = vld [vmem:[%s8 + $0x48] sm:$0xff]
    %v1599 = vld [vmem:[%s8 + $0x50] sm:$0xff]
    %v1600 = vld [vmem:[%s8 + $0x58] sm:$0xff]
    %v1601 = vld [vmem:[%s8 + $0x60] sm:$0xff]
    %v1602 = vld [vmem:[%s8 + $0x68] sm:$0xff]
    %v1603 = vld [vmem:[%s8 + $0x70] sm:$0xff]
    %v1604 = vld [vmem:[%s8 + $0x78] sm:$0xff]
    %v1605 = vld [vmem:[%s8 + $0x80] sm:$0xff]
    %v1606 = vld [vmem:[%s8 + $0x88] sm:$0xff]
    %v1607 = vld [vmem:[%s8 + $0x90] sm:$0xff]
    %v1608 = vld [vmem:[%s8 + $0x98] sm:$0xff]
    %v1609 = vld [vmem:[%s8 + $0xa0] sm:$0xff]
    %v1610 = vld [vmem:[%s8 + $0xa8] sm:$0xff]
    %v1611 = vld [vmem:[%s8 + $0xb0] sm:$0xff]
    %v1612 = vld [vmem:[%s8 + $0xb8] sm:$0xff]
    %v1613 = vld [vmem:[%s8 + $0xc0] sm:$0xff]
    %v1614 = vld [vmem:[%s8 + $0xc8] sm:$0xff]
    %v1615 = vld [vmem:[%s8 + $0xd0] sm:$0xff]
    %v1616 = vld [vmem:[%s8 + $0xd8] sm:$0xff]
    %v1617 = vld [vmem:[%s8 + $0xe0] sm:$0xff]
    %v1618 = vld [vmem:[%s8 + $0xe8] sm:$0xff]
    %v1619 = vld [vmem:[%s8 + $0xf0] sm:$0xff]
    %v1620 = vld [vmem:[%s8 + $0xf8] sm:$0xff]
    %v1621 = vld [vmem:[#allocation3] sm:$0x1]
    %v1623 = vlaneseq
    %v1624 = vshrl.u32 %v1623, 7
    %v1625 = vsub.s32 0, %v1624
    %v1626 = vrot.slane %v1621, %v1625
    %1627 = vset.pattern.permute.xlu0 0
    %1628 = vperm.xlu0 %1627, %v1626
    %v1629 = vpop.permute.xlu0 %1628
    %v1633 = vunpack.c.l.s4 1983009808
    %v1634 = vunpack.c.0.s8 %v1633
    %v1635 = vlaneseq
    %v1636 = vshrl.u32 %v1635, 7
    %v1637 = vsub.s32 %v1634, %v1636
    %v1638 = vrot.slane %v1588, %v1637
    %v1639 = vcombine.high %v1638, %v1638
    %1642 = vmatprep.subr.mxu0 0.0
    %1643 = vmatpush1.msra.mxu0 %v1604
    %1644 = vmatprep.subr.mxu0 0.0
    %1645 = vmatpush1.msra.mxu0 %v1603
    %1646 = vmatprep.subr.mxu0 0.0
    %1647 = vmatpush1.msra.mxu0 %v1602
    %1648 = vmatprep.subr.mxu0 0.0
    %1649 = vmatpush1.msra.mxu0 %v1601
    %1650 = vmatprep.subr.mxu0 0.0
    %1651 = vmatpush1.msra.mxu0 %v1600
    %1652 = vmatprep.subr.mxu0 0.0
    %1653 = vmatpush1.msra.mxu0 %v1599
    %1654 = vmatprep.subr.mxu0 0.0
    %1655 = vmatpush1.msra.mxu0 %v1598
    %1656 = vmatprep.subr.mxu0 0.0
    %1657 = vmatpush1.msra.mxu0 %v1597
    %1658 = vmatprep.subr.mxu0 0.0
    %1659 = vmatpush1.msra.mxu0 %v1596
    %1660 = vmatprep.subr.mxu0 0.0
    %1661 = vmatpush1.msra.mxu0 %v1595
    %1662 = vmatprep.subr.mxu0 0.0
    %1663 = vmatpush1.msra.mxu0 %v1594
    %1664 = vmatprep.subr.mxu0 0.0
    %1665 = vmatpush1.msra.mxu0 %v1593
    %1666 = vmatprep.subr.mxu0 0.0
    %1667 = vmatpush1.msra.mxu0 %v1592
    %1668 = vmatprep.subr.mxu0 0.0
    %1669 = vmatpush1.msra.mxu0 %v1591
    %1670 = vmatprep.subr.mxu0 0.0
    %1671 = vmatpush1.msra.mxu0 %v1590
    %1672 = vmatprep.subr.mxu0 0.0
    %1673 = vmatpush1.msra.mxu0 %v1589
    %1674 = vmatprep.subr.mxu0 0.0
    %1675 = vmatpush2.msra.mxu0 %v1620
    %1676 = vmatprep.subr.mxu0 0.0
    %1677 = vmatpush2.msra.mxu0 %v1619
    %1678 = vmatprep.subr.mxu0 0.0
    %1679 = vmatpush2.msra.mxu0 %v1618
    %1680 = vmatprep.subr.mxu0 0.0
    %1681 = vmatpush2.msra.mxu0 %v1617
    %1682 = vmatprep.subr.mxu0 0.0
    %1683 = vmatpush2.msra.mxu0 %v1616
    %1684 = vmatprep.subr.mxu0 0.0
    %1685 = vmatpush2.msra.mxu0 %v1615
    %1686 = vmatprep.subr.mxu0 0.0
    %1687 = vmatpush2.msra.mxu0 %v1614
    %1688 = vmatprep.subr.mxu0 0.0
    %1689 = vmatpush2.msra.mxu0 %v1613
    %1690 = vmatprep.subr.mxu0 0.0
    %1691 = vmatpush2.msra.mxu0 %v1612
    %1692 = vmatprep.subr.mxu0 0.0
    %1693 = vmatpush2.msra.mxu0 %v1611
    %1694 = vmatprep.subr.mxu0 0.0
    %1695 = vmatpush2.msra.mxu0 %v1610
    %1696 = vmatprep.subr.mxu0 0.0
    %1697 = vmatpush2.msra.mxu0 %v1609
    %1698 = vmatprep.subr.mxu0 0.0
    %1699 = vmatpush2.msra.mxu0 %v1608
    %1700 = vmatprep.subr.mxu0 0.0
    %1701 = vmatpush2.msra.mxu0 %v1607
    %1702 = vmatprep.subr.mxu0 0.0
    %1703 = vmatpush2.msra.mxu0 %v1606
    %1704 = vmatprep.subr.mxu0 0.0
    %1705 = vmatpush2.msra.mxu0 %v1605
    %1706 = vmatprep.mubr.f32.mxu0 %v1639
    %1707 = vmatmul.mubr.f32.gmra.mxu0 %v1638
    %v1708 = vpop.f32.mrf.mxu0
    %v1709 = vadd.f32 %v1629, %v1708
    %v1710 = vpop.f32.mrf.mxu0
    %1711 = vdwg.mxu0
    %v1712 = vld [vmem:[#allocation9] sm:$0x3]
    %vm1713 = vcmask 58368
    %1714 = vst.msk [vmem:[#allocation11] sm:$0x3] %vm1713, %v1709
    %v1715 = vadd.f32 %v1709, %v1712
    %1716 = vst.msk [vmem:[#allocation4] sm:$0x3] %vm1713, %v1715
    %1717 = vst.msk [vmem:[#allocation6] sm:$0x3] %vm355, %v1252
    %1719 = vrot.lane.b32.xlu0 %v1354, 32
    %v1720 = vpop.permute.xlu0 %1719
    %s1722 = scalar_lea.vmem [#allocation6], 2
    %1723 = vst.msk [vmem:[%s1722] sm:$0x3] %vm355, %v1720
    %1725 = vrot.lane.b32.xlu0 %v1231, 96
    %v1726 = vpop.permute.xlu0 %1725
    %1728 = vst.msk [vmem:[#allocation8] sm:$0x3] %vm355, %v1726
    %1730 = vrot.lane.b32.xlu0 %v1348, 96
    %v1731 = vpop.permute.xlu0 %1730
    %s1733 = scalar_lea.vmem [#allocation8], 2
    %1734 = vst.msk [vmem:[%s1733] sm:$0x3] %vm355, %v1731
    // Predicated region
    $region42: #{tpu_custom_call.1} parent=1 // pred_check
      _
    $region43: #{tpu_custom_call.1} parent=1 // pred_check_branch
      %1736 = sbr.rel (0) target = $region45
    $region44: #{tpu_custom_call.1} parent=1 // pred_region
      %s1738 = ssub.s32 32, 32
      %1739 = vsyncadd [#allocation5], %s1738
      %s1741 = sshll.u32 [#allocation4], 4
      %s1742 = int_to_ptr.vmem [resolvable:$true] %s1741
      %1744 = dma.vmem_to_hbm [thread:$0]  %s1742, 32, %s10, [#allocation5]
    $region45: #{tpu_custom_call.1} parent=1 // pred_fallthru
      _
    // Predicated region
    $region46: #{tpu_custom_call.1} parent=1 // pred_check
      _
    $region47: #{tpu_custom_call.1} parent=1 // pred_check_branch
      %1746 = sbr.rel (0) target = $region49
    $region48: #{tpu_custom_call.1} parent=1 // pred_region
      %s1748 = ssub.s32 64, 64
      %1749 = vsyncadd [#allocation7], %s1748
      %s1750 = sshll.u32 [#allocation6], 4
      %s1751 = int_to_ptr.vmem [resolvable:$true] %s1750
      %1756 = dma.vmem_to_hbm [thread:$0]  %s1751, 64, %s11, [#allocation7], 32, 32, 2
    $region49: #{tpu_custom_call.1} parent=1 // pred_fallthru
      _
    // Predicated region
    $region50: #{tpu_custom_call.1} parent=1 // pred_check
      _
    $region51: #{tpu_custom_call.1} parent=1 // pred_check_branch
      %1758 = sbr.rel (0) target = $region53
    $region52: #{tpu_custom_call.1} parent=1 // pred_region
      %s1760 = ssub.s32 64, 64
      %1761 = vsyncadd [#allocation7], %s1760
      %s1762 = sshll.u32 [#allocation8], 4
      %s1763 = int_to_ptr.vmem [resolvable:$true] %s1762
      %1768 = dma.vmem_to_hbm [thread:$0]  %s1763, 64, %s12, [#allocation7], 32, 32, 2
    $region53: #{tpu_custom_call.1} parent=1 // pred_fallthru
      _
    // Predicated region
    $region54: #{tpu_custom_call.1} parent=1 // pred_check
      _
    $region55: #{tpu_custom_call.1} parent=1 // pred_check_branch
      %1770 = sbr.rel (0) target = $region57
    $region56: #{tpu_custom_call.1} parent=1 // pred_region
      %s1772 = ssub.s32 32, 32
      %1773 = vsyncadd [#allocation10], %s1772
      %s1775 = sshll.u32 [#allocation9], 4
      %s1776 = int_to_ptr.vmem [resolvable:$true] %s1775
      %1778 = dma.vmem_to_hbm [thread:$0]  %s1776, 32, %s13, [#allocation10]
    $region57: #{tpu_custom_call.1} parent=1 // pred_fallthru
      _
    // Predicated region
    $region58: #{tpu_custom_call.1} parent=1 // pred_check
      _
    $region59: #{tpu_custom_call.1} parent=1 // pred_check_branch
      %1780 = sbr.rel (0) target = $region61
    $region60: #{tpu_custom_call.1} parent=1 // pred_region
      %s1782 = ssub.s32 32, 32
      %1783 = vsyncadd [#allocation10], %s1782
      %s1785 = sshll.u32 [#allocation11], 4
      %s1786 = int_to_ptr.vmem [resolvable:$true] %s1785
      %1788 = dma.vmem_to_hbm [thread:$0]  %s1786, 32, %s14, [#allocation10]
    $region61: #{tpu_custom_call.1} parent=1 // pred_fallthru
      _
    // Predicated region
    $region62: #{tpu_custom_call.1} parent=1 // pred_check
      _
    $region63: #{tpu_custom_call.1} parent=1 // pred_check_branch
      %1790 = sbr.rel (0) target = $region65
    $region64: #{tpu_custom_call.1} parent=1 // pred_region
      %1791 = dma.done [#allocation5], 32
    $region65: #{tpu_custom_call.1} parent=1 // pred_fallthru
      _
    // Predicated region
    $region66: #{tpu_custom_call.1} parent=1 // pred_check
      _
    $region67: #{tpu_custom_call.1} parent=1 // pred_check_branch
      %1793 = sbr.rel (0) target = $region69
    $region68: #{tpu_custom_call.1} parent=1 // pred_region
      %1794 = dma.done [#allocation7], 64
    $region69: #{tpu_custom_call.1} parent=1 // pred_fallthru
      _
    // Predicated region
    $region70: #{tpu_custom_call.1} parent=1 // pred_check
      _
    $region71: #{tpu_custom_call.1} parent=1 // pred_check_branch
      %1796 = sbr.rel (0) target = $region73
    $region72: #{tpu_custom_call.1} parent=1 // pred_region
      %1797 = dma.done [#allocation7], 64
    $region73: #{tpu_custom_call.1} parent=1 // pred_fallthru
      _
    // Predicated region
    $region74: #{tpu_custom_call.1} parent=1 // pred_check
      _
    $region75: #{tpu_custom_call.1} parent=1 // pred_check_branch
      %1799 = sbr.rel (0) target = $region77
    $region76: #{tpu_custom_call.1} parent=1 // pred_region
      %1800 = dma.done [#allocation10], 32
    $region77: #{tpu_custom_call.1} parent=1 // pred_fallthru
      _
    // Predicated region
    $region78: #{tpu_custom_call.1} parent=1 // pred_check
      _
    $region79: #{tpu_custom_call.1} parent=1 // pred_check_branch
      %1802 = sbr.rel (0) target = $region81
    $region80: #{tpu_custom_call.1} parent=1 // pred_region
      %1803 = dma.done [#allocation10], 32
    $region81: #{tpu_custom_call.1} parent=1 // pred_fallthru
      _
    %1804 = vsyncpa [#allocation5], 1
    %1805 = vsyncpa [#allocation7], 1
    %1806 = vsyncpa [#allocation10], 1

</llo_original>
